<compile_context>
chip_gen: v7x
topology: tpu7x:2x2x1
jax: 0.10.0
libtpu: 0.0.40
codegen_flags: <defaults>
</compile_context>

<pallas_src>
import functools

import jax
import jax.numpy as jnp
from jax.experimental import pallas as pl
from jax.experimental.pallas import tpu as pltpu


# ----------------------------------------------------------------------------
# In-kernel math helpers
# ----------------------------------------------------------------------------
def _gelu(x):
    # tanh-approx GELU (transcendental goes to the EUP slot).
    c = 0.7978845608028654  # sqrt(2/pi)
    return 0.5 * x * (1.0 + jnp.tanh(c * (x + 0.044715 * x * x * x)))


def _layernorm(x, gamma, beta, eps=1e-5):
    mu = jnp.mean(x, axis=-1, keepdims=True)
    var = jnp.mean((x - mu) ** 2, axis=-1, keepdims=True)
    return (x - mu) * jax.lax.rsqrt(var + eps) * gamma + beta


# ----------------------------------------------------------------------------
# Pallas kernel: one (batch-block, layer) step of the decoder
# ----------------------------------------------------------------------------
def decoder_kernel(x_ref, pos_ref,
                   ln1_g_ref, ln1_b_ref, wqkv_ref, wo_ref,
                   ln2_g_ref, ln2_b_ref, w1_ref, b1_ref, w2_ref, b2_ref,
                   proj_w_ref, proj_b_ref,
                   o_ref,
                   x_vmem, a_vmem,
                   *, n_heads):
    d = pl.program_id(1)
    bblk, L, D = x_ref.shape
    hw = D // n_heads
    BL = bblk * L
    Pp = proj_w_ref.shape[-1]

    # ---- init the per-batch-block activation carry at the first layer ------
    @pl.when(d == 0)
    def _():
        x_vmem[...] = x_ref[...] + pos_ref[...]            # (Bblk, L, D) f32

    x = x_vmem[...].reshape(BL, D)                         # flatten tokens

    # ---- MSA with pre-LayerNorm skip connection -----------------------------
    xn = _layernorm(x, ln1_g_ref[0], ln1_b_ref[0]).astype(jnp.bfloat16)
    # fused lane-dense QKV projection; q columns are pre-scaled by width**-0.5
    qkv = jnp.dot(xn, wqkv_ref[0],
                  preferred_element_type=jnp.float32)      # (BL, 3D) f32
    qkv = qkv.astype(jnp.bfloat16)

    # per-(batch, head) attention; head split via static lane slices only
    for h in range(n_heads):
        q_h = qkv[:, h * hw:(h + 1) * hw].reshape(bblk, L, hw)
        k_h = qkv[:, D + h * hw: D + (h + 1) * hw].reshape(bblk, L, hw)
        v_h = qkv[:, 2 * D + h * hw: 2 * D + (h + 1) * hw].reshape(bblk, L, hw)
        s = jnp.einsum('bld,bmd->blm', q_h, k_h,
                       preferred_element_type=jnp.float32)  # (Bblk, L, L) f32
        s = s - jnp.max(s, axis=-1, keepdims=True)
        e = jnp.exp(s)
        p = e * pl.reciprocal(jnp.sum(e, axis=-1, keepdims=True), approx=True)
        a_h = jnp.einsum('blm,bmd->bld', p.astype(jnp.bfloat16), v_h,
                         preferred_element_type=jnp.float32)  # (Bblk, L, hw)
        # stage merged heads for a single lane-dense output projection
        a_vmem[:, h * hw:(h + 1) * hw] = a_h.reshape(BL, hw).astype(jnp.bfloat16)

    attn = jnp.dot(a_vmem[...], wo_ref[0],
                   preferred_element_type=jnp.float32)      # (BL, D) f32
    x = x + attn

    # ---- MLP with pre-LayerNorm skip connection -----------------------------
    xn2 = _layernorm(x, ln2_g_ref[0], ln2_b_ref[0]).astype(jnp.bfloat16)
    h1 = _gelu(jnp.dot(xn2, w1_ref[0],
                       preferred_element_type=jnp.float32) + b1_ref[0])
    h2 = _gelu(jnp.dot(h1.astype(jnp.bfloat16), w2_ref[0],
                       preferred_element_type=jnp.float32) + b2_ref[0])
    x = x + h2
    x_vmem[...] = x.reshape(bblk, L, D)

    # ---- final linear projection to (lane-padded) per-patch pixel values ----
    @pl.when(d == pl.num_programs(1) - 1)
    def _():
        out = jnp.dot(x.astype(jnp.bfloat16), proj_w_ref[...],
                      preferred_element_type=jnp.float32) + proj_b_ref[...]
        o_ref[...] = out.reshape(bblk, L, Pp)


# ----------------------------------------------------------------------------
# Parameter preparation (plain JAX, outside the kernel)
# ----------------------------------------------------------------------------
def _prepare_kernel_params(params, *, depth, width, p_pad):
    D = width
    P = params["proj_w"].shape[1]
    scale = D ** (-0.5)                     # PyTorch model scales by width**-0.5

    # fold the attention scale into the q columns of the fused QKV weight
    qkv_w = params["qkv_w"]                                   # (depth, D, 3D)
    qkv_w = jnp.concatenate([qkv_w[:, :, :D] * scale, qkv_w[:, :, D:]], axis=2)

    proj_w = jnp.zeros((D, p_pad), jnp.bfloat16).at[:, :P].set(
        params["proj_w"].astype(jnp.bfloat16))
    proj_b = jnp.zeros((1, p_pad), jnp.float32).at[:, :P].set(params["proj_b"])

    return dict(
        pos=params["pos"].astype(jnp.float32),
        ln1_g=params["ln1_g"].reshape(depth, 1, D),
        ln1_b=params["ln1_b"].reshape(depth, 1, D),
        wqkv=qkv_w.astype(jnp.bfloat16),
        wo=params["out_w"].astype(jnp.bfloat16),
        ln2_g=params["ln2_g"].reshape(depth, 1, D),
        ln2_b=params["ln2_b"].reshape(depth, 1, D),
        w1=params["w1"].astype(jnp.bfloat16),
        b1=params["b1"].reshape(depth, 1, 4 * D),
        w2=params["w2"].astype(jnp.bfloat16),
        b2=params["b2"].reshape(depth, 1, D),
        proj_w=proj_w, proj_b=proj_b,
    )


def _largest_divisor_leq(n, cap):
    cap = max(1, min(n, cap))
    for c in range(cap, 0, -1):
        if n % c == 0:
            return c
    return 1


# ----------------------------------------------------------------------------
# Wrapper
# ----------------------------------------------------------------------------
def decoder_forward(x, params, *, depth, n_heads, patch_size, cell_size,
                    max_batch_block=8):
    B, L, D = x.shape
    P = params["proj_w"].shape[1]                     # patch_size**2 * 3
    Pp = max(128, ((P + 127) // 128) * 128)           # lane-dense output width

    # batch block: reuse each layer's weights across Bblk*L tokens, keep the
    # MXU M dimension filled, and bound the (BL, 4D) intermediate size.
    bblk = _largest_divisor_leq(B, min(max_batch_block, max(1, 1024 // L)))
    nb = B // bblk
    BL = bblk * L

    kp = _prepare_kernel_params(params, depth=depth, width=D, p_pad=Pp)

    # ---- explicit VMEM budget (weights double-buffered + residents + interm.)
    bf2, f4 = 2, 4
    layer_w = bf2 * (3 * D * D + D * D + 4 * D * D + 4 * D * D) \
        + f4 * (4 * D + 4 * D + D)
    resident = (2 * f4 * BL * D          # x block (double-buffered)
                + 2 * f4 * L * D         # pos
                + 2 * f4 * BL * Pp       # output block
                + 2 * bf2 * D * Pp + 2 * f4 * Pp   # projection weights/bias
                + f4 * BL * D            # x carry scratch
                + bf2 * BL * D)          # head-merge staging scratch
    interm = (f4 * BL * 3 * D + bf2 * BL * 3 * D       # qkv f32 + bf16
              + 3 * f4 * bblk * L * L + bf2 * bblk * L * L  # per-head scores
              + f4 * BL * 4 * D + bf2 * BL * 4 * D     # h1
              + 5 * f4 * BL * D)                       # misc x / attn copies
    budget = 2 * layer_w + resident + interm + (8 << 20)
    try:
        phys_vmem = int(pltpu.get_tpu_info().vmem_capacity_bytes)
    except Exception:
        phys_vmem = 64 << 20                           # conservative (v7x)
    vmem_limit = int(min(max(budget, 16 << 20), int(phys_vmem * 0.85)))

    kernel = functools.partial(decoder_kernel, n_heads=n_heads)

    out_tokens = pl.pallas_call(
        kernel,
        out_shape=jax.ShapeDtypeStruct((B, L, Pp), jnp.float32),
        grid_spec=pltpu.PrefetchScalarGridSpec(
            num_scalar_prefetch=0,
            grid=(nb, depth),
            in_specs=[
                pl.BlockSpec((bblk, L, D), lambda b, d: (b, 0, 0)),       # x
                pl.BlockSpec((L, D), lambda b, d: (0, 0)),                # pos
                pl.BlockSpec((1, 1, D), lambda b, d: (d, 0, 0)),          # ln1_g
                pl.BlockSpec((1, 1, D), lambda b, d: (d, 0, 0)),          # ln1_b
                pl.BlockSpec((1, D, 3 * D), lambda b, d: (d, 0, 0)),      # wqkv
                pl.BlockSpec((1, D, D), lambda b, d: (d, 0, 0)),          # wo
                pl.BlockSpec((1, 1, D), lambda b, d: (d, 0, 0)),          # ln2_g
                pl.BlockSpec((1, 1, D), lambda b, d: (d, 0, 0)),          # ln2_b
                pl.BlockSpec((1, D, 4 * D), lambda b, d: (d, 0, 0)),      # w1
                pl.BlockSpec((1, 1, 4 * D), lambda b, d: (d, 0, 0)),      # b1
                pl.BlockSpec((1, 4 * D, D), lambda b, d: (d, 0, 0)),      # w2
                pl.BlockSpec((1, 1, D), lambda b, d: (d, 0, 0)),          # b2
                pl.BlockSpec((D, Pp), lambda b, d: (0, 0)),               # proj_w
                pl.BlockSpec((1, Pp), lambda b, d: (0, 0)),               # proj_b
            ],
            out_specs=pl.BlockSpec((bblk, L, Pp), lambda b, d: (b, 0, 0)),
            scratch_shapes=[
                pltpu.VMEM((bblk, L, D), jnp.float32),       # activation carry
                pltpu.VMEM((bblk * L, D), jnp.bfloat16),     # head-merge staging
            ]),
        compiler_params=pltpu.CompilerParams(
            dimension_semantics=("parallel", "arbitrary"),
            vmem_limit_bytes=vmem_limit),
    )(x.astype(jnp.float32), kp["pos"],
      kp["ln1_g"], kp["ln1_b"], kp["wqkv"], kp["wo"],
      kp["ln2_g"], kp["ln2_b"], kp["w1"], kp["b1"], kp["w2"], kp["b2"],
      kp["proj_w"], kp["proj_b"])

    out_tokens = out_tokens[:, :, :P]                 # drop lane padding
    # glue: 'b (i1 i2) (p1 p2 c) -> b c (i1 p1) (i2 p2)'   (NCHW output)
    y = out_tokens.reshape(B, cell_size, cell_size, patch_size, patch_size, 3)
    y = y.transpose(0, 5, 1, 3, 2, 4)
    return y.reshape(B, 3, cell_size * patch_size, cell_size * patch_size)


# ----------------------------------------------------------------------------
# Parameter / positional-embedding construction (deterministic, synthetic)
# ----------------------------------------------------------------------------
def sincos_pos_embed(length, dim):
    pos = jnp.arange(length, dtype=jnp.float32)[:, None]
    i = jnp.arange(dim // 2, dtype=jnp.float32)[None, :]
    angle = pos / jnp.power(10000.0, 2.0 * i / dim)
    pe = jnp.zeros((length, dim), jnp.float32)
    pe = pe.at[:, 0::2].set(jnp.sin(angle))
    pe = pe.at[:, 1::2].set(jnp.cos(angle))
    return pe


def init_params(key, *, depth, width, n_heads, patch_size, seq_len):
    del n_heads
    P = patch_size ** 2 * 3
    ks = jax.random.split(key, 8)
    s = 0.05
    return dict(
        pos=sincos_pos_embed(seq_len, width),
        ln1_g=jnp.ones((depth, width), jnp.float32),
        ln1_b=jnp.zeros((depth, width), jnp.float32),
        # all matmul weights stored as (in, out) so the model does x @ W
        qkv_w=s * jax.random.normal(ks[0], (depth, width, 3 * width), jnp.float32),
        out_w=s * jax.random.normal(ks[1], (depth, width, width), jnp.float32),
        ln2_g=jnp.ones((depth, width), jnp.float32),
        ln2_b=jnp.zeros((depth, width), jnp.float32),
        w1=s * jax.random.normal(ks[2], (depth, width, 4 * width), jnp.float32),
        b1=s * jax.random.normal(ks[3], (depth, 4 * width), jnp.float32),
        w2=s * jax.random.normal(ks[4], (depth, 4 * width, width), jnp.float32),
        b2=s * jax.random.normal(ks[5], (depth, width), jnp.float32),
        proj_w=s * jax.random.normal(ks[6], (width, P), jnp.float32),
        proj_b=s * jax.random.normal(ks[7], (1, P), jnp.float32),
    )


# ----------------------------------------------------------------------------
# Pure-JAX f32 reference (mirrors the PyTorch forward) for a sanity check
# ----------------------------------------------------------------------------
def reference_forward(x, params, *, depth, n_heads, patch_size, cell_size):
    B, L, D = x.shape
    hw = D // n_heads
    scale = D ** (-0.5)

    def ln(v, g, b, eps=1e-5):
        mu = v.mean(-1, keepdims=True)
        var = ((v - mu) ** 2).mean(-1, keepdims=True)
        return (v - mu) / jnp.sqrt(var + eps) * g + b

    gelu = lambda v: jax.nn.gelu(v, approximate=False)   # PyTorch nn.GELU()

    x = x + params["pos"][None]
    for d in range(depth):
        xn = ln(x, params["ln1_g"][d], params["ln1_b"][d])
        qkv = xn @ params["qkv_w"][d]
        q, k, v = jnp.split(qkv, 3, axis=-1)
        q = q.reshape(B, L, n_heads, hw)
        k = k.reshape(B, L, n_heads, hw)
        v = v.reshape(B, L, n_heads, hw)
        s = jnp.einsum("binh,bjnh->bijn", q, k) * scale
        w = jax.nn.softmax(s, axis=2)
        a = jnp.einsum("bijn,bjnh->binh", w, v).reshape(B, L, D)
        x = a @ params["out_w"][d] + x
        xn = ln(x, params["ln2_g"][d], params["ln2_b"][d])
        h1 = gelu(xn @ params["w1"][d] + params["b1"][d])
        h2 = gelu(h1 @ params["w2"][d] + params["b2"][d])
        x = h2 + x
    y = x @ params["proj_w"] + params["proj_b"]
    y = y.reshape(B, cell_size, cell_size, patch_size, patch_size, 3)
    y = y.transpose(0, 5, 1, 3, 2, 4)
    return y.reshape(B, 3, cell_size * patch_size, cell_size * patch_size)


# ----------------------------------------------------------------------------
if __name__ == "__main__":
    # Small, forward-consistent shapes: 8x8 image, 2x2 patches -> 16 tokens.
    img_size, patch_size, depth, width, n_heads = 8, 2, 2, 32, 4
    cell_size = img_size // patch_size
    B, L, D = 2, cell_size * cell_size, width

    key = jax.random.PRNGKey(0)
    k_param, k_x = jax.random.split(key)
    params = init_params(k_param, depth=depth, width=width, n_heads=n_heads,
                         patch_size=patch_size, seq_len=L)
    x = jax.random.normal(k_x, (B, L, D), jnp.float32)   # decoder token input

    out = decoder_forward(x, params, depth=depth, n_heads=n_heads,
                          patch_size=patch_size, cell_size=cell_size)
    out = jax.block_until_ready(out)

    assert out.shape == (B, 3, img_size, img_size), out.shape

    ref = reference_forward(x, params, depth=depth, n_heads=n_heads,
                            patch_size=patch_size, cell_size=cell_size)
    max_err = float(jnp.max(jnp.abs(out - ref)))
    ref_scale = float(jnp.max(jnp.abs(ref)))
    # loosened tolerance: bf16 MXU matmuls + tanh-GELU + approx-reciprocal
    # softmax in the kernel vs exact-erf f32 XLA reference
    assert max_err < 7.5e-2 * max(1.0, ref_scale), \
        f"mismatch vs reference: {max_err} (ref scale {ref_scale})"

    print("KERNEL_OK")
</pallas_src>

<mosaic_0001>
module attributes {stable_mosaic.version = 11 : i64} {
  func.func @decoder_kernel(%arg0: i32, %arg1: i32, %arg2: memref<2x16x32xf32, #tpu.memory_space<vmem>>, %arg3: memref<16x32xf32, #tpu.memory_space<vmem>>, %arg4: memref<1x1x32xf32, #tpu.memory_space<vmem>>, %arg5: memref<1x1x32xf32, #tpu.memory_space<vmem>>, %arg6: memref<1x32x96xbf16, #tpu.memory_space<vmem>>, %arg7: memref<1x32x32xbf16, #tpu.memory_space<vmem>>, %arg8: memref<1x1x32xf32, #tpu.memory_space<vmem>>, %arg9: memref<1x1x32xf32, #tpu.memory_space<vmem>>, %arg10: memref<1x32x128xbf16, #tpu.memory_space<vmem>>, %arg11: memref<1x1x128xf32, #tpu.memory_space<vmem>>, %arg12: memref<1x128x32xbf16, #tpu.memory_space<vmem>>, %arg13: memref<1x1x32xf32, #tpu.memory_space<vmem>>, %arg14: memref<32x128xbf16, #tpu.memory_space<vmem>>, %arg15: memref<1x128xf32, #tpu.memory_space<vmem>>, %arg16: memref<2x16x128xf32, #tpu.memory_space<vmem>>, %arg17: memref<2x16x32xf32, #tpu.memory_space<vmem>>, %arg18: memref<32x32xbf16, #tpu.memory_space<vmem>>) attributes {dimension_semantics = [#tpu.dimension_semantics<parallel>, #tpu.dimension_semantics<arbitrary>], iteration_bounds = array<i64: 1, 2>, scalar_prefetch = 0 : i64, scratch_operands = 2 : i64, tpu.core_type = #tpu.core_type<tc>, window_params = [{transform_indices = @transform_0, window_bounds = array<i64: 2, 16, 32>}, {pipeline_mode = #tpu.pipeline_mode<synchronous>, transform_indices = @transform_1, window_bounds = array<i64: 16, 32>}, {transform_indices = @transform_2, window_bounds = array<i64: 1, 1, 32>}, {transform_indices = @transform_3, window_bounds = array<i64: 1, 1, 32>}, {transform_indices = @transform_4, window_bounds = array<i64: 1, 32, 96>}, {transform_indices = @transform_5, window_bounds = array<i64: 1, 32, 32>}, {transform_indices = @transform_6, window_bounds = array<i64: 1, 1, 32>}, {transform_indices = @transform_7, window_bounds = array<i64: 1, 1, 32>}, {transform_indices = @transform_8, window_bounds = array<i64: 1, 32, 128>}, {transform_indices = @transform_9, window_bounds = array<i64: 1, 1, 128>}, {transform_indices = @transform_10, window_bounds = array<i64: 1, 128, 32>}, {transform_indices = @transform_11, window_bounds = array<i64: 1, 1, 32>}, {pipeline_mode = #tpu.pipeline_mode<synchronous>, transform_indices = @transform_12, window_bounds = array<i64: 32, 128>}, {pipeline_mode = #tpu.pipeline_mode<synchronous>, transform_indices = @transform_13, window_bounds = array<i64: 1, 128>}, {transform_indices = @transform_14, window_bounds = array<i64: 2, 16, 128>}]} {
    %c0_i32 = arith.constant 0 : i32
    %0 = arith.cmpi eq, %arg1, %c0_i32 : i32
    %1 = arith.extui %0 : i1 to i32
    %c0_i32_0 = arith.constant 0 : i32
    %2 = arith.cmpi ne, %1, %c0_i32_0 : i32
    scf.if %2 {
      %c0_81 = arith.constant 0 : index
      %c0_82 = arith.constant 0 : index
      %c0_83 = arith.constant 0 : index
      %203 = vector.load %arg2[%c0_81, %c0_82, %c0_83] : memref<2x16x32xf32, #tpu.memory_space<vmem>>, vector<2x16x32xf32>
      %c0_84 = arith.constant 0 : index
      %c0_85 = arith.constant 0 : index
      %204 = vector.load %arg3[%c0_84, %c0_85] : memref<16x32xf32, #tpu.memory_space<vmem>>, vector<16x32xf32>
      %205 = vector.shape_cast %204 : vector<16x32xf32> to vector<1x16x32xf32>
      %206 = vector.broadcast %205 : vector<1x16x32xf32> to vector<2x16x32xf32>
      %207 = arith.addf %203, %206 : vector<2x16x32xf32>
      %c0_86 = arith.constant 0 : index
      %c0_87 = arith.constant 0 : index
      %c0_88 = arith.constant 0 : index
      %208 = vector.load %arg17[%c0_86, %c0_87, %c0_88] : memref<2x16x32xf32, #tpu.memory_space<vmem>>, vector<2x16x32xf32>
      tpu.vector_store %arg17[%c0_86, %c0_87, %c0_88], %207 {strides = array<i32>} : memref<2x16x32xf32, #tpu.memory_space<vmem>>, vector<2x16x32xf32>,
    } else {
    }
    %c0 = arith.constant 0 : index
    %c0_1 = arith.constant 0 : index
    %c0_2 = arith.constant 0 : index
    %3 = vector.load %arg17[%c0, %c0_1, %c0_2] : memref<2x16x32xf32, #tpu.memory_space<vmem>>, vector<2x16x32xf32>
    %4 = vector.shape_cast %3 : vector<2x16x32xf32> to vector<32x32xf32>
    %c0_3 = arith.constant 0 : index
    %c0_4 = arith.constant 0 : index
    %c0_5 = arith.constant 0 : index
    %5 = vector.load %arg4[%c0_3, %c0_4, %c0_5] : memref<1x1x32xf32, #tpu.memory_space<vmem>>, vector<1x1x32xf32>
    %6 = vector.shape_cast %5 : vector<1x1x32xf32> to vector<1x32xf32>
    %c0_6 = arith.constant 0 : index
    %c0_7 = arith.constant 0 : index
    %c0_8 = arith.constant 0 : index
    %7 = vector.load %arg5[%c0_6, %c0_7, %c0_8] : memref<1x1x32xf32, #tpu.memory_space<vmem>>, vector<1x1x32xf32>
    %8 = vector.shape_cast %7 : vector<1x1x32xf32> to vector<1x32xf32>
    %cst = arith.constant dense<0.000000e+00> : vector<32xf32>
    %9 = vector.multi_reduction <add>, %4, %cst [1] : vector<32x32xf32> to vector<32xf32>
    %10 = vector.shape_cast %9 : vector<32xf32> to vector<32x1xf32>
    %cst_9 = arith.constant 3.200000e+01 : f32
    %11 = vector.broadcast %cst_9 : f32 to vector<32x1xf32>
    %12 = arith.divf %10, %11 : vector<32x1xf32>
    %13 = vector.broadcast %12 : vector<32x1xf32> to vector<32x32xf32>
    %14 = arith.subf %4, %13 : vector<32x32xf32>
    %15 = arith.mulf %14, %14 : vector<32x32xf32>
    %cst_10 = arith.constant dense<0.000000e+00> : vector<32xf32>
    %16 = vector.multi_reduction <add>, %15, %cst_10 [1] : vector<32x32xf32> to vector<32xf32>
    %17 = vector.shape_cast %16 : vector<32xf32> to vector<32x1xf32>
    %cst_11 = arith.constant 3.200000e+01 : f32
    %18 = vector.broadcast %cst_11 : f32 to vector<32x1xf32>
    %19 = arith.divf %17, %18 : vector<32x1xf32>
    %20 = vector.broadcast %12 : vector<32x1xf32> to vector<32x32xf32>
    %21 = arith.subf %4, %20 : vector<32x32xf32>
    %cst_12 = arith.constant 9.99999974E-6 : f32
    %22 = vector.broadcast %cst_12 : f32 to vector<32x1xf32>
    %23 = arith.addf %19, %22 : vector<32x1xf32>
    %24 = math.rsqrt %23 : vector<32x1xf32>
    %25 = vector.broadcast %24 : vector<32x1xf32> to vector<32x32xf32>
    %26 = arith.mulf %21, %25 : vector<32x32xf32>
    %27 = vector.broadcast %6 : vector<1x32xf32> to vector<32x32xf32>
    %28 = arith.mulf %26, %27 : vector<32x32xf32>
    %29 = vector.broadcast %8 : vector<1x32xf32> to vector<32x32xf32>
    %30 = arith.addf %28, %29 : vector<32x32xf32>
    %31 = arith.truncf %30 : vector<32x32xf32> to vector<32x32xbf16>
    %c0_13 = arith.constant 0 : index
    %c0_14 = arith.constant 0 : index
    %c0_15 = arith.constant 0 : index
    %32 = vector.load %arg6[%c0_13, %c0_14, %c0_15] : memref<1x32x96xbf16, #tpu.memory_space<vmem>>, vector<1x32x96xbf16>
    %33 = vector.shape_cast %32 : vector<1x32x96xbf16> to vector<32x96xbf16>
    %cst_16 = arith.constant dense<0.000000e+00> : vector<32x96xf32>
    %34 = tpu.matmul %31, %33, %cst_16 {dimension_numbers = #tpu.dot_dimension_numbers<[1], [0], [0], [1], [0, 0, 1, 1], [], []>} : vector<32x32xbf16>, vector<32x96xbf16>, vector<32x96xf32> -> vector<32x96xf32>
    %35 = arith.truncf %34 : vector<32x96xf32> to vector<32x96xbf16>
    %36 = vector.extract_strided_slice %35 {offsets = [0, 0], sizes = [32, 8], strides = [1, 1]} : vector<32x96xbf16> to vector<32x8xbf16>
    %37 = vector.shape_cast %36 : vector<32x8xbf16> to vector<2x16x8xbf16>
    %38 = vector.extract_strided_slice %35 {offsets = [0, 32], sizes = [32, 8], strides = [1, 1]} : vector<32x96xbf16> to vector<32x8xbf16>
    %39 = vector.shape_cast %38 : vector<32x8xbf16> to vector<2x16x8xbf16>
    %40 = vector.extract_strided_slice %35 {offsets = [0, 64], sizes = [32, 8], strides = [1, 1]} : vector<32x96xbf16> to vector<32x8xbf16>
    %41 = vector.shape_cast %40 : vector<32x8xbf16> to vector<2x16x8xbf16>
    "tpu.trace_start"() <{level = 10 : i32, message = "bld,bmd->blm"}> : () -> ()
    %cst_17 = arith.constant dense<0.000000e+00> : vector<2x16x16xf32>
    %42 = tpu.matmul %37, %39, %cst_17 {dimension_numbers = #tpu.dot_dimension_numbers<[2], [2], [1], [1], [0, 0, 0, 1, 1, 1], [0], [0]>} : vector<2x16x8xbf16>, vector<2x16x8xbf16>, vector<2x16x16xf32> -> vector<2x16x16xf32>
    "tpu.trace_stop"() : () -> ()
    %cst_18 = arith.constant dense<0xFF800000> : vector<2x16xf32>
    %43 = vector.multi_reduction <maximumf>, %42, %cst_18 [2] : vector<2x16x16xf32> to vector<2x16xf32>
    %44 = vector.shape_cast %43 : vector<2x16xf32> to vector<2x16x1xf32>
    %45 = vector.broadcast %44 : vector<2x16x1xf32> to vector<2x16x16xf32>
    %46 = arith.subf %42, %45 : vector<2x16x16xf32>
    %47 = math.exp %46 : vector<2x16x16xf32>
    %cst_19 = arith.constant dense<0.000000e+00> : vector<2x16xf32>
    %48 = vector.multi_reduction <add>, %47, %cst_19 [2] : vector<2x16x16xf32> to vector<2x16xf32>
    %49 = vector.shape_cast %48 : vector<2x16xf32> to vector<2x16x1xf32>
    %50 = tpu.reciprocal %49 {approx = true} : vector<2x16x1xf32> -> vector<2x16x1xf32>
    %51 = vector.broadcast %50 : vector<2x16x1xf32> to vector<2x16x16xf32>
    %52 = arith.mulf %47, %51 : vector<2x16x16xf32>
    %53 = arith.truncf %52 : vector<2x16x16xf32> to vector<2x16x16xbf16>
    "tpu.trace_start"() <{level = 10 : i32, message = "blm,bmd->bld"}> : () -> ()
    %cst_20 = arith.constant dense<0.000000e+00> : vector<2x16x8xf32>
    %54 = tpu.matmul %53, %41, %cst_20 {dimension_numbers = #tpu.dot_dimension_numbers<[2], [1], [1], [2], [0, 0, 0, 1, 1, 2], [0], [0]>} : vector<2x16x16xbf16>, vector<2x16x8xbf16>, vector<2x16x8xf32> -> vector<2x16x8xf32>
    "tpu.trace_stop"() : () -> ()
    %55 = vector.shape_cast %54 : vector<2x16x8xf32> to vector<32x8xf32>
    %56 = arith.truncf %55 : vector<32x8xf32> to vector<32x8xbf16>
    %c0_21 = arith.constant 0 : index
    %c0_22 = arith.constant 0 : index
    %57 = vector.load %arg18[%c0_21, %c0_22] : memref<32x32xbf16, #tpu.memory_space<vmem>>, vector<32x8xbf16>
    tpu.vector_store %arg18[%c0_21, %c0_22], %56 {strides = array<i32>} : memref<32x32xbf16, #tpu.memory_space<vmem>>, vector<32x8xbf16>,
    %58 = vector.extract_strided_slice %35 {offsets = [0, 8], sizes = [32, 8], strides = [1, 1]} : vector<32x96xbf16> to vector<32x8xbf16>
    %59 = vector.shape_cast %58 : vector<32x8xbf16> to vector<2x16x8xbf16>
    %60 = vector.extract_strided_slice %35 {offsets = [0, 40], sizes = [32, 8], strides = [1, 1]} : vector<32x96xbf16> to vector<32x8xbf16>
    %61 = vector.shape_cast %60 : vector<32x8xbf16> to vector<2x16x8xbf16>
    %62 = vector.extract_strided_slice %35 {offsets = [0, 72], sizes = [32, 8], strides = [1, 1]} : vector<32x96xbf16> to vector<32x8xbf16>
    %63 = vector.shape_cast %62 : vector<32x8xbf16> to vector<2x16x8xbf16>
    "tpu.trace_start"() <{level = 10 : i32, message = "bld,bmd->blm"}> : () -> ()
    %cst_23 = arith.constant dense<0.000000e+00> : vector<2x16x16xf32>
    %64 = tpu.matmul %59, %61, %cst_23 {dimension_numbers = #tpu.dot_dimension_numbers<[2], [2], [1], [1], [0, 0, 0, 1, 1, 1], [0], [0]>} : vector<2x16x8xbf16>, vector<2x16x8xbf16>, vector<2x16x16xf32> -> vector<2x16x16xf32>
    "tpu.trace_stop"() : () -> ()
    %cst_24 = arith.constant dense<0xFF800000> : vector<2x16xf32>
    %65 = vector.multi_reduction <maximumf>, %64, %cst_24 [2] : vector<2x16x16xf32> to vector<2x16xf32>
    %66 = vector.shape_cast %65 : vector<2x16xf32> to vector<2x16x1xf32>
    %67 = vector.broadcast %66 : vector<2x16x1xf32> to vector<2x16x16xf32>
    %68 = arith.subf %64, %67 : vector<2x16x16xf32>
    %69 = math.exp %68 : vector<2x16x16xf32>
    %cst_25 = arith.constant dense<0.000000e+00> : vector<2x16xf32>
    %70 = vector.multi_reduction <add>, %69, %cst_25 [2] : vector<2x16x16xf32> to vector<2x16xf32>
    %71 = vector.shape_cast %70 : vector<2x16xf32> to vector<2x16x1xf32>
    %72 = tpu.reciprocal %71 {approx = true} : vector<2x16x1xf32> -> vector<2x16x1xf32>
    %73 = vector.broadcast %72 : vector<2x16x1xf32> to vector<2x16x16xf32>
    %74 = arith.mulf %69, %73 : vector<2x16x16xf32>
    %75 = arith.truncf %74 : vector<2x16x16xf32> to vector<2x16x16xbf16>
    "tpu.trace_start"() <{level = 10 : i32, message = "blm,bmd->bld"}> : () -> ()
    %cst_26 = arith.constant dense<0.000000e+00> : vector<2x16x8xf32>
    %76 = tpu.matmul %75, %63, %cst_26 {dimension_numbers = #tpu.dot_dimension_numbers<[2], [1], [1], [2], [0, 0, 0, 1, 1, 2], [0], [0]>} : vector<2x16x16xbf16>, vector<2x16x8xbf16>, vector<2x16x8xf32> -> vector<2x16x8xf32>
    "tpu.trace_stop"() : () -> ()
    %77 = vector.shape_cast %76 : vector<2x16x8xf32> to vector<32x8xf32>
    %78 = arith.truncf %77 : vector<32x8xf32> to vector<32x8xbf16>
    %c0_27 = arith.constant 0 : index
    %c8 = arith.constant 8 : index
    %79 = vector.load %arg18[%c0_27, %c8] : memref<32x32xbf16, #tpu.memory_space<vmem>>, vector<32x8xbf16>
    tpu.vector_store %arg18[%c0_27, %c8], %78 {strides = array<i32>} : memref<32x32xbf16, #tpu.memory_space<vmem>>, vector<32x8xbf16>,
    %80 = vector.extract_strided_slice %35 {offsets = [0, 16], sizes = [32, 8], strides = [1, 1]} : vector<32x96xbf16> to vector<32x8xbf16>
    %81 = vector.shape_cast %80 : vector<32x8xbf16> to vector<2x16x8xbf16>
    %82 = vector.extract_strided_slice %35 {offsets = [0, 48], sizes = [32, 8], strides = [1, 1]} : vector<32x96xbf16> to vector<32x8xbf16>
    %83 = vector.shape_cast %82 : vector<32x8xbf16> to vector<2x16x8xbf16>
    %84 = vector.extract_strided_slice %35 {offsets = [0, 80], sizes = [32, 8], strides = [1, 1]} : vector<32x96xbf16> to vector<32x8xbf16>
    %85 = vector.shape_cast %84 : vector<32x8xbf16> to vector<2x16x8xbf16>
    "tpu.trace_start"() <{level = 10 : i32, message = "bld,bmd->blm"}> : () -> ()
    %cst_28 = arith.constant dense<0.000000e+00> : vector<2x16x16xf32>
    %86 = tpu.matmul %81, %83, %cst_28 {dimension_numbers = #tpu.dot_dimension_numbers<[2], [2], [1], [1], [0, 0, 0, 1, 1, 1], [0], [0]>} : vector<2x16x8xbf16>, vector<2x16x8xbf16>, vector<2x16x16xf32> -> vector<2x16x16xf32>
    "tpu.trace_stop"() : () -> ()
    %cst_29 = arith.constant dense<0xFF800000> : vector<2x16xf32>
    %87 = vector.multi_reduction <maximumf>, %86, %cst_29 [2] : vector<2x16x16xf32> to vector<2x16xf32>
    %88 = vector.shape_cast %87 : vector<2x16xf32> to vector<2x16x1xf32>
    %89 = vector.broadcast %88 : vector<2x16x1xf32> to vector<2x16x16xf32>
    %90 = arith.subf %86, %89 : vector<2x16x16xf32>
    %91 = math.exp %90 : vector<2x16x16xf32>
    %cst_30 = arith.constant dense<0.000000e+00> : vector<2x16xf32>
    %92 = vector.multi_reduction <add>, %91, %cst_30 [2] : vector<2x16x16xf32> to vector<2x16xf32>
    %93 = vector.shape_cast %92 : vector<2x16xf32> to vector<2x16x1xf32>
    %94 = tpu.reciprocal %93 {approx = true} : vector<2x16x1xf32> -> vector<2x16x1xf32>
    %95 = vector.broadcast %94 : vector<2x16x1xf32> to vector<2x16x16xf32>
    %96 = arith.mulf %91, %95 : vector<2x16x16xf32>
    %97 = arith.truncf %96 : vector<2x16x16xf32> to vector<2x16x16xbf16>
    "tpu.trace_start"() <{level = 10 : i32, message = "blm,bmd->bld"}> : () -> ()
    %cst_31 = arith.constant dense<0.000000e+00> : vector<2x16x8xf32>
    %98 = tpu.matmul %97, %85, %cst_31 {dimension_numbers = #tpu.dot_dimension_numbers<[2], [1], [1], [2], [0, 0, 0, 1, 1, 2], [0], [0]>} : vector<2x16x16xbf16>, vector<2x16x8xbf16>, vector<2x16x8xf32> -> vector<2x16x8xf32>
    "tpu.trace_stop"() : () -> ()
    %99 = vector.shape_cast %98 : vector<2x16x8xf32> to vector<32x8xf32>
    %100 = arith.truncf %99 : vector<32x8xf32> to vector<32x8xbf16>
    %c0_32 = arith.constant 0 : index
    %c16 = arith.constant 16 : index
    %101 = vector.load %arg18[%c0_32, %c16] : memref<32x32xbf16, #tpu.memory_space<vmem>>, vector<32x8xbf16>
    tpu.vector_store %arg18[%c0_32, %c16], %100 {strides = array<i32>} : memref<32x32xbf16, #tpu.memory_space<vmem>>, vector<32x8xbf16>,
    %102 = vector.extract_strided_slice %35 {offsets = [0, 24], sizes = [32, 8], strides = [1, 1]} : vector<32x96xbf16> to vector<32x8xbf16>
    %103 = vector.shape_cast %102 : vector<32x8xbf16> to vector<2x16x8xbf16>
    %104 = vector.extract_strided_slice %35 {offsets = [0, 56], sizes = [32, 8], strides = [1, 1]} : vector<32x96xbf16> to vector<32x8xbf16>
    %105 = vector.shape_cast %104 : vector<32x8xbf16> to vector<2x16x8xbf16>
    %106 = vector.extract_strided_slice %35 {offsets = [0, 88], sizes = [32, 8], strides = [1, 1]} : vector<32x96xbf16> to vector<32x8xbf16>
    %107 = vector.shape_cast %106 : vector<32x8xbf16> to vector<2x16x8xbf16>
    "tpu.trace_start"() <{level = 10 : i32, message = "bld,bmd->blm"}> : () -> ()
    %cst_33 = arith.constant dense<0.000000e+00> : vector<2x16x16xf32>
    %108 = tpu.matmul %103, %105, %cst_33 {dimension_numbers = #tpu.dot_dimension_numbers<[2], [2], [1], [1], [0, 0, 0, 1, 1, 1], [0], [0]>} : vector<2x16x8xbf16>, vector<2x16x8xbf16>, vector<2x16x16xf32> -> vector<2x16x16xf32>
    "tpu.trace_stop"() : () -> ()
    %cst_34 = arith.constant dense<0xFF800000> : vector<2x16xf32>
    %109 = vector.multi_reduction <maximumf>, %108, %cst_34 [2] : vector<2x16x16xf32> to vector<2x16xf32>
    %110 = vector.shape_cast %109 : vector<2x16xf32> to vector<2x16x1xf32>
    %111 = vector.broadcast %110 : vector<2x16x1xf32> to vector<2x16x16xf32>
    %112 = arith.subf %108, %111 : vector<2x16x16xf32>
    %113 = math.exp %112 : vector<2x16x16xf32>
    %cst_35 = arith.constant dense<0.000000e+00> : vector<2x16xf32>
    %114 = vector.multi_reduction <add>, %113, %cst_35 [2] : vector<2x16x16xf32> to vector<2x16xf32>
    %115 = vector.shape_cast %114 : vector<2x16xf32> to vector<2x16x1xf32>
    %116 = tpu.reciprocal %115 {approx = true} : vector<2x16x1xf32> -> vector<2x16x1xf32>
    %117 = vector.broadcast %116 : vector<2x16x1xf32> to vector<2x16x16xf32>
    %118 = arith.mulf %113, %117 : vector<2x16x16xf32>
    %119 = arith.truncf %118 : vector<2x16x16xf32> to vector<2x16x16xbf16>
    "tpu.trace_start"() <{level = 10 : i32, message = "blm,bmd->bld"}> : () -> ()
    %cst_36 = arith.constant dense<0.000000e+00> : vector<2x16x8xf32>
    %120 = tpu.matmul %119, %107, %cst_36 {dimension_numbers = #tpu.dot_dimension_numbers<[2], [1], [1], [2], [0, 0, 0, 1, 1, 2], [0], [0]>} : vector<2x16x16xbf16>, vector<2x16x8xbf16>, vector<2x16x8xf32> -> vector<2x16x8xf32>
    "tpu.trace_stop"() : () -> ()
    %121 = vector.shape_cast %120 : vector<2x16x8xf32> to vector<32x8xf32>
    %122 = arith.truncf %121 : vector<32x8xf32> to vector<32x8xbf16>
    %c0_37 = arith.constant 0 : index
    %c24 = arith.constant 24 : index
    %123 = vector.load %arg18[%c0_37, %c24] : memref<32x32xbf16, #tpu.memory_space<vmem>>, vector<32x8xbf16>
    tpu.vector_store %arg18[%c0_37, %c24], %122 {strides = array<i32>} : memref<32x32xbf16, #tpu.memory_space<vmem>>, vector<32x8xbf16>,
    %c0_38 = arith.constant 0 : index
    %c0_39 = arith.constant 0 : index
    %124 = vector.load %arg18[%c0_38, %c0_39] : memref<32x32xbf16, #tpu.memory_space<vmem>>, vector<32x32xbf16>
    %c0_40 = arith.constant 0 : index
    %c0_41 = arith.constant 0 : index
    %c0_42 = arith.constant 0 : index
    %125 = vector.load %arg7[%c0_40, %c0_41, %c0_42] : memref<1x32x32xbf16, #tpu.memory_space<vmem>>, vector<1x32x32xbf16>
    %126 = vector.shape_cast %125 : vector<1x32x32xbf16> to vector<32x32xbf16>
    %cst_43 = arith.constant dense<0.000000e+00> : vector<32x32xf32>
    %127 = tpu.matmul %124, %126, %cst_43 {dimension_numbers = #tpu.dot_dimension_numbers<[1], [0], [0], [1], [0, 0, 1, 1], [], []>} : vector<32x32xbf16>, vector<32x32xbf16>, vector<32x32xf32> -> vector<32x32xf32>
    %128 = arith.addf %4, %127 : vector<32x32xf32>
    %c0_44 = arith.constant 0 : index
    %c0_45 = arith.constant 0 : index
    %c0_46 = arith.constant 0 : index
    %129 = vector.load %arg8[%c0_44, %c0_45, %c0_46] : memref<1x1x32xf32, #tpu.memory_space<vmem>>, vector<1x1x32xf32>
    %130 = vector.shape_cast %129 : vector<1x1x32xf32> to vector<1x32xf32>
    %c0_47 = arith.constant 0 : index
    %c0_48 = arith.constant 0 : index
    %c0_49 = arith.constant 0 : index
    %131 = vector.load %arg9[%c0_47, %c0_48, %c0_49] : memref<1x1x32xf32, #tpu.memory_space<vmem>>, vector<1x1x32xf32>
    %132 = vector.shape_cast %131 : vector<1x1x32xf32> to vector<1x32xf32>
    %cst_50 = arith.constant dense<0.000000e+00> : vector<32xf32>
    %133 = vector.multi_reduction <add>, %128, %cst_50 [1] : vector<32x32xf32> to vector<32xf32>
    %134 = vector.shape_cast %133 : vector<32xf32> to vector<32x1xf32>
    %cst_51 = arith.constant 3.200000e+01 : f32
    %135 = vector.broadcast %cst_51 : f32 to vector<32x1xf32>
    %136 = arith.divf %134, %135 : vector<32x1xf32>
    %137 = vector.broadcast %136 : vector<32x1xf32> to vector<32x32xf32>
    %138 = arith.subf %128, %137 : vector<32x32xf32>
    %139 = arith.mulf %138, %138 : vector<32x32xf32>
    %cst_52 = arith.constant dense<0.000000e+00> : vector<32xf32>
    %140 = vector.multi_reduction <add>, %139, %cst_52 [1] : vector<32x32xf32> to vector<32xf32>
    %141 = vector.shape_cast %140 : vector<32xf32> to vector<32x1xf32>
    %cst_53 = arith.constant 3.200000e+01 : f32
    %142 = vector.broadcast %cst_53 : f32 to vector<32x1xf32>
    %143 = arith.divf %141, %142 : vector<32x1xf32>
    %144 = vector.broadcast %136 : vector<32x1xf32> to vector<32x32xf32>
    %145 = arith.subf %128, %144 : vector<32x32xf32>
    %cst_54 = arith.constant 9.99999974E-6 : f32
    %146 = vector.broadcast %cst_54 : f32 to vector<32x1xf32>
    %147 = arith.addf %143, %146 : vector<32x1xf32>
    %148 = math.rsqrt %147 : vector<32x1xf32>
    %149 = vector.broadcast %148 : vector<32x1xf32> to vector<32x32xf32>
    %150 = arith.mulf %145, %149 : vector<32x32xf32>
    %151 = vector.broadcast %130 : vector<1x32xf32> to vector<32x32xf32>
    %152 = arith.mulf %150, %151 : vector<32x32xf32>
    %153 = vector.broadcast %132 : vector<1x32xf32> to vector<32x32xf32>
    %154 = arith.addf %152, %153 : vector<32x32xf32>
    %155 = arith.truncf %154 : vector<32x32xf32> to vector<32x32xbf16>
    %c0_55 = arith.constant 0 : index
    %c0_56 = arith.constant 0 : index
    %c0_57 = arith.constant 0 : index
    %156 = vector.load %arg10[%c0_55, %c0_56, %c0_57] : memref<1x32x128xbf16, #tpu.memory_space<vmem>>, vector<1x32x128xbf16>
    %157 = vector.shape_cast %156 : vector<1x32x128xbf16> to vector<32x128xbf16>
    %cst_58 = arith.constant dense<0.000000e+00> : vector<32x128xf32>
    %158 = tpu.matmul %155, %157, %cst_58 {dimension_numbers = #tpu.dot_dimension_numbers<[1], [0], [0], [1], [0, 0, 1, 1], [], []>} : vector<32x32xbf16>, vector<32x128xbf16>, vector<32x128xf32> -> vector<32x128xf32>
    %c0_59 = arith.constant 0 : index
    %c0_60 = arith.constant 0 : index
    %c0_61 = arith.constant 0 : index
    %159 = vector.load %arg11[%c0_59, %c0_60, %c0_61] : memref<1x1x128xf32, #tpu.memory_space<vmem>>, vector<1x1x128xf32>
    %160 = vector.shape_cast %159 : vector<1x1x128xf32> to vector<1x128xf32>
    %161 = vector.broadcast %160 : vector<1x128xf32> to vector<32x128xf32>
    %162 = arith.addf %158, %161 : vector<32x128xf32>
    %cst_62 = arith.constant 5.000000e-01 : f32
    %163 = vector.broadcast %cst_62 : f32 to vector<32x128xf32>
    %164 = arith.mulf %163, %162 : vector<32x128xf32>
    %cst_63 = arith.constant 4.471500e-02 : f32
    %165 = vector.broadcast %cst_63 : f32 to vector<32x128xf32>
    %166 = arith.mulf %165, %162 : vector<32x128xf32>
    %167 = arith.mulf %166, %162 : vector<32x128xf32>
    %168 = arith.mulf %167, %162 : vector<32x128xf32>
    %169 = arith.addf %162, %168 : vector<32x128xf32>
    %cst_64 = arith.constant 0.797884583 : f32
    %170 = vector.broadcast %cst_64 : f32 to vector<32x128xf32>
    %171 = arith.mulf %170, %169 : vector<32x128xf32>
    %172 = math.tanh %171 : vector<32x128xf32>
    %cst_65 = arith.constant 1.000000e+00 : f32
    %173 = vector.broadcast %cst_65 : f32 to vector<32x128xf32>
    %174 = arith.addf %173, %172 : vector<32x128xf32>
    %175 = arith.mulf %164, %174 : vector<32x128xf32>
    %176 = arith.truncf %175 : vector<32x128xf32> to vector<32x128xbf16>
    %c0_66 = arith.constant 0 : index
    %c0_67 = arith.constant 0 : index
    %c0_68 = arith.constant 0 : index
    %177 = vector.load %arg12[%c0_66, %c0_67, %c0_68] : memref<1x128x32xbf16, #tpu.memory_space<vmem>>, vector<1x128x32xbf16>
    %178 = vector.shape_cast %177 : vector<1x128x32xbf16> to vector<128x32xbf16>
    %cst_69 = arith.constant dense<0.000000e+00> : vector<32x32xf32>
    %179 = tpu.matmul %176, %178, %cst_69 {dimension_numbers = #tpu.dot_dimension_numbers<[1], [0], [0], [1], [0, 0, 1, 1], [], []>} : vector<32x128xbf16>, vector<128x32xbf16>, vector<32x32xf32> -> vector<32x32xf32>
    %c0_70 = arith.constant 0 : index
    %c0_71 = arith.constant 0 : index
    %c0_72 = arith.constant 0 : index
    %180 = vector.load %arg13[%c0_70, %c0_71, %c0_72] : memref<1x1x32xf32, #tpu.memory_space<vmem>>, vector<1x1x32xf32>
    %181 = vector.shape_cast %180 : vector<1x1x32xf32> to vector<1x32xf32>
    %182 = vector.broadcast %181 : vector<1x32xf32> to vector<32x32xf32>
    %183 = arith.addf %179, %182 : vector<32x32xf32>
    %cst_73 = arith.constant 5.000000e-01 : f32
    %184 = vector.broadcast %cst_73 : f32 to vector<32x32xf32>
    %185 = arith.mulf %184, %183 : vector<32x32xf32>
    %cst_74 = arith.constant 4.471500e-02 : f32
    %186 = vector.broadcast %cst_74 : f32 to vector<32x32xf32>
    %187 = arith.mulf %186, %183 : vector<32x32xf32>
    %188 = arith.mulf %187, %183 : vector<32x32xf32>
    %189 = arith.mulf %188, %183 : vector<32x32xf32>
    %190 = arith.addf %183, %189 : vector<32x32xf32>
    %cst_75 = arith.constant 0.797884583 : f32
    %191 = vector.broadcast %cst_75 : f32 to vector<32x32xf32>
    %192 = arith.mulf %191, %190 : vector<32x32xf32>
    %193 = math.tanh %192 : vector<32x32xf32>
    %cst_76 = arith.constant 1.000000e+00 : f32
    %194 = vector.broadcast %cst_76 : f32 to vector<32x32xf32>
    %195 = arith.addf %194, %193 : vector<32x32xf32>
    %196 = arith.mulf %185, %195 : vector<32x32xf32>
    %197 = arith.addf %128, %196 : vector<32x32xf32>
    %198 = vector.shape_cast %197 : vector<32x32xf32> to vector<2x16x32xf32>
    %c0_77 = arith.constant 0 : index
    %c0_78 = arith.constant 0 : index
    %c0_79 = arith.constant 0 : index
    %199 = vector.load %arg17[%c0_77, %c0_78, %c0_79] : memref<2x16x32xf32, #tpu.memory_space<vmem>>, vector<2x16x32xf32>
    tpu.vector_store %arg17[%c0_77, %c0_78, %c0_79], %198 {strides = array<i32>} : memref<2x16x32xf32, #tpu.memory_space<vmem>>, vector<2x16x32xf32>,
    %c1_i32 = arith.constant 1 : i32
    %200 = arith.cmpi eq, %arg1, %c1_i32 : i32
    %201 = arith.extui %200 : i1 to i32
    %c0_i32_80 = arith.constant 0 : i32
    %202 = arith.cmpi ne, %201, %c0_i32_80 : i32
    scf.if %202 {
      %203 = arith.truncf %197 : vector<32x32xf32> to vector<32x32xbf16>
      %c0_81 = arith.constant 0 : index
      %c0_82 = arith.constant 0 : index
      %204 = vector.load %arg14[%c0_81, %c0_82] : memref<32x128xbf16, #tpu.memory_space<vmem>>, vector<32x128xbf16>
      %cst_83 = arith.constant dense<0.000000e+00> : vector<32x128xf32>
      %205 = tpu.matmul %203, %204, %cst_83 {dimension_numbers = #tpu.dot_dimension_numbers<[1], [0], [0], [1], [0, 0, 1, 1], [], []>} : vector<32x32xbf16>, vector<32x128xbf16>, vector<32x128xf32> -> vector<32x128xf32>
      %c0_84 = arith.constant 0 : index
      %c0_85 = arith.constant 0 : index
      %206 = vector.load %arg15[%c0_84, %c0_85] : memref<1x128xf32, #tpu.memory_space<vmem>>, vector<1x128xf32>
      %207 = vector.broadcast %206 : vector<1x128xf32> to vector<32x128xf32>
      %208 = arith.addf %205, %207 : vector<32x128xf32>
      %209 = vector.shape_cast %208 : vector<32x128xf32> to vector<2x16x128xf32>
      %c0_86 = arith.constant 0 : index
      %c0_87 = arith.constant 0 : index
      %c0_88 = arith.constant 0 : index
      %210 = vector.load %arg16[%c0_86, %c0_87, %c0_88] : memref<2x16x128xf32, #tpu.memory_space<vmem>>, vector<2x16x128xf32>
      tpu.vector_store %arg16[%c0_86, %c0_87, %c0_88], %209 {strides = array<i32>} : memref<2x16x128xf32, #tpu.memory_space<vmem>>, vector<2x16x128xf32>,
    } else {
    }
    return
  }
  func.func @transform_0(%arg0: i32, %arg1: i32) -> (i32, i32, i32) {
    %c0_i32 = arith.constant 0 : i32
    %c0_i32_0 = arith.constant 0 : i32
    %c0_i32_1 = arith.constant 0 : i32
    return %arg0, %c0_i32, %c0_i32_0 : i32, i32, i32
  }
  func.func @transform_1(%arg0: i32, %arg1: i32) -> (i32, i32) {
    %c0_i32 = arith.constant 0 : i32
    %c0_i32_0 = arith.constant 0 : i32
    %c0_i32_1 = arith.constant 0 : i32
    return %c0_i32, %c0_i32_0 : i32, i32
  }
  func.func @transform_2(%arg0: i32, %arg1: i32) -> (i32, i32, i32) {
    %c0_i32 = arith.constant 0 : i32
    %c0_i32_0 = arith.constant 0 : i32
    %c0_i32_1 = arith.constant 0 : i32
    return %arg1, %c0_i32, %c0_i32_0 : i32, i32, i32
  }
  func.func @transform_3(%arg0: i32, %arg1: i32) -> (i32, i32, i32) {
    %c0_i32 = arith.constant 0 : i32
    %c0_i32_0 = arith.constant 0 : i32
    %c0_i32_1 = arith.constant 0 : i32
    return %arg1, %c0_i32, %c0_i32_0 : i32, i32, i32
  }
  func.func @transform_4(%arg0: i32, %arg1: i32) -> (i32, i32, i32) {
    %c0_i32 = arith.constant 0 : i32
    %c0_i32_0 = arith.constant 0 : i32
    %c0_i32_1 = arith.constant 0 : i32
    return %arg1, %c0_i32, %c0_i32_0 : i32, i32, i32
  }
  func.func @transform_5(%arg0: i32, %arg1: i32) -> (i32, i32, i32) {
    %c0_i32 = arith.constant 0 : i32
    %c0_i32_0 = arith.constant 0 : i32
    %c0_i32_1 = arith.constant 0 : i32
    return %arg1, %c0_i32, %c0_i32_0 : i32, i32, i32
  }
  func.func @transform_6(%arg0: i32, %arg1: i32) -> (i32, i32, i32) {
    %c0_i32 = arith.constant 0 : i32
    %c0_i32_0 = arith.constant 0 : i32
    %c0_i32_1 = arith.constant 0 : i32
    return %arg1, %c0_i32, %c0_i32_0 : i32, i32, i32
  }
  func.func @transform_7(%arg0: i32, %arg1: i32) -> (i32, i32, i32) {
    %c0_i32 = arith.constant 0 : i32
    %c0_i32_0 = arith.constant 0 : i32
    %c0_i32_1 = arith.constant 0 : i32
    return %arg1, %c0_i32, %c0_i32_0 : i32, i32, i32
  }
  func.func @transform_8(%arg0: i32, %arg1: i32) -> (i32, i32, i32) {
    %c0_i32 = arith.constant 0 : i32
    %c0_i32_0 = arith.constant 0 : i32
    %c0_i32_1 = arith.constant 0 : i32
    return %arg1, %c0_i32, %c0_i32_0 : i32, i32, i32
  }
  func.func @transform_9(%arg0: i32, %arg1: i32) -> (i32, i32, i32) {
    %c0_i32 = arith.constant 0 : i32
    %c0_i32_0 = arith.constant 0 : i32
    %c0_i32_1 = arith.constant 0 : i32
    return %arg1, %c0_i32, %c0_i32_0 : i32, i32, i32
  }
  func.func @transform_10(%arg0: i32, %arg1: i32) -> (i32, i32, i32) {
    %c0_i32 = arith.constant 0 : i32
    %c0_i32_0 = arith.constant 0 : i32
    %c0_i32_1 = arith.constant 0 : i32
    return %arg1, %c0_i32, %c0_i32_0 : i32, i32, i32
  }
  func.func @transform_11(%arg0: i32, %arg1: i32) -> (i32, i32, i32) {
    %c0_i32 = arith.constant 0 : i32
    %c0_i32_0 = arith.constant 0 : i32
    %c0_i32_1 = arith.constant 0 : i32
    return %arg1, %c0_i32, %c0_i32_0 : i32, i32, i32
  }
  func.func @transform_12(%arg0: i32, %arg1: i32) -> (i32, i32) {
    %c0_i32 = arith.constant 0 : i32
    %c0_i32_0 = arith.constant 0 : i32
    %c0_i32_1 = arith.constant 0 : i32
    return %c0_i32, %c0_i32_0 : i32, i32
  }
  func.func @transform_13(%arg0: i32, %arg1: i32) -> (i32, i32) {
    %c0_i32 = arith.constant 0 : i32
    %c0_i32_0 = arith.constant 0 : i32
    %c0_i32_1 = arith.constant 0 : i32
    return %c0_i32, %c0_i32_0 : i32, i32
  }
  func.func @transform_14(%arg0: i32, %arg1: i32) -> (i32, i32, i32) {
    %c0_i32 = arith.constant 0 : i32
    %c0_i32_0 = arith.constant 0 : i32
    %c0_i32_1 = arith.constant 0 : i32
    return %arg0, %c0_i32, %c0_i32_0 : i32, i32, i32
  }
}

</mosaic_0001>

<llo_original>
// kernel: tpu_custom_call.1
$region0: #{tpu_custom_call.1}
  #allocation0 [shape = 'u32[]', space=smem, size = 0x4, offset = 0x4, fixed_abs, tag = 'smem constant byte address 0x4 - core index']
  #allocation1 [shape = 'u32[144,128]{1,0:T(1,128)}', space=vmem, size = 0x12000, scoped, tag = 'internal scratch']
  #allocation2 [shape = 'f32[2,16,32]{2,1,0:T(8,128)}', space=vmem, size = 0x4000, scoped, tag = 'scratch operand']
  #allocation3 [shape = 'bf16[32,32]{1,0:T(16,128)(2,1)}', space=vmem, size = 0x2000, scoped, tag = 'scratch operand']
  %s0 = inlined_call_operand.vmem [shape: f32[2,16,32], index: 0, kind: input, shape index: {}]
  %s1 = inlined_call_operand.vmem [shape: f32[16,32], index: 1, kind: input, shape index: {}]
  %s2 = inlined_call_operand.vmem [shape: f32[2,1,32], index: 2, kind: input, shape index: {}]
  %s3 = inlined_call_operand.vmem [shape: f32[2,1,32], index: 3, kind: input, shape index: {}]
  %s4 = inlined_call_operand.vmem [shape: bf16[2,32,96], index: 4, kind: input, shape index: {}]
  %s5 = inlined_call_operand.vmem [shape: bf16[2,32,32], index: 5, kind: input, shape index: {}]
  %s6 = inlined_call_operand.hbm [shape: f32[2,1,32], index: 6, kind: input, shape index: {}]
  %s7 = inlined_call_operand.hbm [shape: f32[2,1,32], index: 7, kind: input, shape index: {}]
  %s8 = inlined_call_operand.vmem [shape: bf16[2,32,128], index: 8, kind: input, shape index: {}]
  %s9 = inlined_call_operand.hbm [shape: f32[2,1,128], index: 9, kind: input, shape index: {}]
  %s10 = inlined_call_operand.vmem [shape: bf16[2,128,32], index: 10, kind: input, shape index: {}]
  %s11 = inlined_call_operand.vmem [shape: f32[2,1,32], index: 11, kind: input, shape index: {}]
  %s12 = inlined_call_operand.vmem [shape: bf16[32,128], index: 12, kind: input, shape index: {}]
  %s13 = inlined_call_operand.vmem [shape: f32[1,128], index: 13, kind: input, shape index: {}]
  %s14 = inlined_call_operand.hbm [shape: f32[2,16,128], index: 14, kind: output, shape index: {}]
  %s15 = sld [smem:[#allocation0]]
  $region109: #{tpu_custom_call.1} parent=0
    _
  %s17 = ssub.s32 1, %s15
  %s18 = scalar_select 0, %s17, %s15
  $region1: #{tpu_custom_call.1} parent=0
    #allocation4 [shape = 'u8[1024]{0}', space=vmem, size = 0x400, scoped, tag = 'input window, operand 6']
    #allocation5 [shape = 's32[2]{0}', space=sflag, size = 0x8, scoped, tag = 'scoped memory for tpu_custom_call.1']
    #allocation6 [shape = 's32[2]{0}', space=sflag, size = 0x8, scoped, tag = 'scoped memory for tpu_custom_call.1']
    #allocation7 [shape = 'u8[1024]{0}', space=vmem, size = 0x400, scoped, tag = 'input window, operand 7']
    #allocation8 [shape = 's32[2]{0}', space=sflag, size = 0x8, scoped, tag = 'scoped memory for tpu_custom_call.1']
    #allocation9 [shape = 'u8[1024]{0}', space=vmem, size = 0x400, scoped, tag = 'input window, operand 9']
    #allocation10 [shape = 'u8[16384]{0}', space=vmem, size = 0x4000, scoped, tag = 'output window, operand 0, single buffered']
    %19 = vsyncpa [#allocation5], 0
    %s20 = scalar_lea.sflag [#allocation5], 1
    %21 = vsyncpa %s20, 0
    %22 = vsyncpa [#allocation8], 0
    %s23 = scalar_lea.sflag [#allocation8], 1
    %24 = vsyncpa %s23, 0
    %25 = vsyncpa [#allocation6], 0
    loop: start=0, step=1, limit=4
    $region2: #{tpu_custom_call.1} parent=1 // loop_pre_header
      _
    $region3: #{tpu_custom_call.1} parent=1 // loop_header
      %s27 = sphi 0, %s31
      %p28 = scmp.ge.s32.totalorder %s27, 4
      %s34 = sphi 0, %s46
      %s35 = sphi 0, %s42
      %s36 = sphi 0, %s34
      %s37 = sphi 0, %s35
      %s38 = sphi 0, %s36
      %s39 = sphi 0, %s37
      %s49 = sphi 0, %s51
      %s52 = sphi 0, %s49
      %s53 = sphi 0, %s52
      %s69 = sphi 0, %s53
      %s73 = sphi 0, %s73
      %s75 = sphi 0, %s73
      %s76 = sphi 0, %s75
      %s90 = sphi 0, %s76
      %s96 = sphi 0, %s98
      %s99 = sphi 0, %s96
      %s100 = sphi 0, %s99
      %s116 = sphi 0, %s100
      %s122 = sphi 0, %s124
      %s125 = sphi 0, %s122
      %s126 = sphi 0, %s125
      %s142 = sphi 0, %s126
      %s148 = sphi 0, %s150
      %s151 = sphi 0, %s148
      %s152 = sphi 0, %s151
      %s168 = sphi 0, %s152
      %s174 = sphi 0, %s176
      %s177 = sphi 0, %s174
      %s178 = sphi 0, %s177
      %s194 = sphi 0, %s178
      %s200 = sphi 0, %s202
      %s203 = sphi 0, %s200
      %s204 = sphi 0, %s203
      %s220 = sphi 0, %s204
      %s226 = sphi 0, %s228
      %s229 = sphi 0, %s226
      %s230 = sphi 0, %s229
      %s246 = sphi 0, %s230
      %s252 = sphi 0, %s254
      %s255 = sphi 0, %s252
      %s256 = sphi 0, %s255
      %s272 = sphi 0, %s256
      %s278 = sphi 0, %s280
      %s281 = sphi 0, %s278
      %s282 = sphi 0, %s281
      %s298 = sphi 0, %s282
      %s304 = sphi 0, %s306
      %s307 = sphi 0, %s304
      %s308 = sphi 0, %s307
      %s324 = sphi 0, %s308
      %s330 = sphi 0, %s332
      %s333 = sphi 0, %s330
      %s334 = sphi 0, %s333
      %s350 = sphi 0, %s334
      %s354 = sphi 0, %s354
      %s356 = sphi 0, %s354
      %s357 = sphi 0, %s356
      %s371 = sphi 0, %s357
      %s375 = sphi 0, %s375
      %s377 = sphi 0, %s375
      %s378 = sphi 0, %s377
      %s392 = sphi 0, %s378
      %s398 = sphi 0, %s400
      %s401 = sphi 0, %s398
      %s402 = sphi 0, %s401
      %s418 = sphi 0, %s402
    $region4: #{tpu_custom_call.1} parent=1 // loop_header_branch
      %30 = sbr.rel (%p28) target = $region8
    $region5: #{tpu_custom_call.1} parent=1 // loop_body
      %s32 = ssub.s32 %s27, 1
      %s33 = ssub.s32 %s27, 2
      %s40 = sadd.s32 1, %s35
      %p41 = scmp.ge.s32.totalorder %s40, 2
      %s42 = scalar_select %p41, 0, %s40
      %s43 = sadd.s32 1, %s34
      %s44 = scalar_select %p41, %s43, %s34
      %p45 = scmp.ge.s32.totalorder %s44, 1
      %s46 = scalar_select %p45, 0, %s44
      %s47 = ssub.s32 %s34, %s46
      %p48 = scmp.eq.s32.totalorder %s47, 0
      %s50 = sadd.s32 %s49, 1
      %s51 = scalar_select %p48, %s49, %s50
      %p54 = pneg %p48
      %p55 = scmp.eq.s32.totalorder %s27, 1
      %p56 = por %p54, %p55
      %p57 = scmp.ne.s32.totalorder %s49, %s52
      %p58 = scmp.eq.s32.totalorder %s27, 0
      %p59 = por %p57, %p58
      %p60 = scmp.ne.s32.totalorder %s49, %s52
      %p61 = scmp.eq.s32.totalorder %s32, 1
      %p62 = por %p60, %p61
      %p63 = scmp.ne.s32.totalorder %s52, %s53
      %p64 = scmp.eq.s32.totalorder %s32, 0
      %p65 = por %p63, %p64
      %p66 = scmp.ne.s32.totalorder %s52, %s53
      %p67 = scmp.eq.s32.totalorder %s33, 1
      %p68 = por %p66, %p67
      %p70 = scmp.ne.s32.totalorder %s53, %s69
      %p71 = scmp.eq.s32.totalorder %s33, 0
      %p72 = por %p70, %p71
      %s74 = sadd.s32 %s73, 1
      %p77 = scmp.eq.s32.totalorder %s27, 1
      %p78 = scmp.ne.s32.totalorder %s73, %s75
      %p79 = scmp.eq.s32.totalorder %s27, 0
      %p80 = por %p78, %p79
      %p81 = scmp.ne.s32.totalorder %s73, %s75
      %p82 = scmp.eq.s32.totalorder %s32, 1
      %p83 = por %p81, %p82
      %p84 = scmp.ne.s32.totalorder %s75, %s76
      %p85 = scmp.eq.s32.totalorder %s32, 0
      %p86 = por %p84, %p85
      %p87 = scmp.ne.s32.totalorder %s75, %s76
      %p88 = scmp.eq.s32.totalorder %s33, 1
      %p89 = por %p87, %p88
      %p91 = scmp.ne.s32.totalorder %s76, %s90
      %p92 = scmp.eq.s32.totalorder %s33, 0
      %p93 = por %p91, %p92
      %s94 = ssub.s32 %s35, %s42
      %p95 = scmp.eq.s32.totalorder %s94, 0
      %s97 = sadd.s32 %s96, 1
      %s98 = scalar_select %p95, %s96, %s97
      %p101 = pneg %p95
      %p102 = scmp.eq.s32.totalorder %s27, 1
      %p103 = por %p101, %p102
      %p104 = scmp.ne.s32.totalorder %s96, %s99
      %p105 = scmp.eq.s32.totalorder %s27, 0
      %p106 = por %p104, %p105
      %p107 = scmp.ne.s32.totalorder %s96, %s99
      %p108 = scmp.eq.s32.totalorder %s32, 1
      %p109 = por %p107, %p108
      %p110 = scmp.ne.s32.totalorder %s99, %s100
      %p111 = scmp.eq.s32.totalorder %s32, 0
      %p112 = por %p110, %p111
      %p113 = scmp.ne.s32.totalorder %s99, %s100
      %p114 = scmp.eq.s32.totalorder %s33, 1
      %p115 = por %p113, %p114
      %p117 = scmp.ne.s32.totalorder %s100, %s116
      %p118 = scmp.eq.s32.totalorder %s33, 0
      %p119 = por %p117, %p118
      %s120 = ssub.s32 %s35, %s42
      %p121 = scmp.eq.s32.totalorder %s120, 0
      %s123 = sadd.s32 %s122, 1
      %s124 = scalar_select %p121, %s122, %s123
      %p127 = pneg %p121
      %p128 = scmp.eq.s32.totalorder %s27, 1
      %p129 = por %p127, %p128
      %p130 = scmp.ne.s32.totalorder %s122, %s125
      %p131 = scmp.eq.s32.totalorder %s27, 0
      %p132 = por %p130, %p131
      %p133 = scmp.ne.s32.totalorder %s122, %s125
      %p134 = scmp.eq.s32.totalorder %s32, 1
      %p135 = por %p133, %p134
      %p136 = scmp.ne.s32.totalorder %s125, %s126
      %p137 = scmp.eq.s32.totalorder %s32, 0
      %p138 = por %p136, %p137
      %p139 = scmp.ne.s32.totalorder %s125, %s126
      %p140 = scmp.eq.s32.totalorder %s33, 1
      %p141 = por %p139, %p140
      %p143 = scmp.ne.s32.totalorder %s126, %s142
      %p144 = scmp.eq.s32.totalorder %s33, 0
      %p145 = por %p143, %p144
      %s146 = ssub.s32 %s35, %s42
      %p147 = scmp.eq.s32.totalorder %s146, 0
      %s149 = sadd.s32 %s148, 1
      %s150 = scalar_select %p147, %s148, %s149
      %p153 = pneg %p147
      %p154 = scmp.eq.s32.totalorder %s27, 1
      %p155 = por %p153, %p154
      %p156 = scmp.ne.s32.totalorder %s148, %s151
      %p157 = scmp.eq.s32.totalorder %s27, 0
      %p158 = por %p156, %p157
      %p159 = scmp.ne.s32.totalorder %s148, %s151
      %p160 = scmp.eq.s32.totalorder %s32, 1
      %p161 = por %p159, %p160
      %p162 = scmp.ne.s32.totalorder %s151, %s152
      %p163 = scmp.eq.s32.totalorder %s32, 0
      %p164 = por %p162, %p163
      %p165 = scmp.ne.s32.totalorder %s151, %s152
      %p166 = scmp.eq.s32.totalorder %s33, 1
      %p167 = por %p165, %p166
      %p169 = scmp.ne.s32.totalorder %s152, %s168
      %p170 = scmp.eq.s32.totalorder %s33, 0
      %p171 = por %p169, %p170
      %s172 = ssub.s32 %s35, %s42
      %p173 = scmp.eq.s32.totalorder %s172, 0
      %s175 = sadd.s32 %s174, 1
      %s176 = scalar_select %p173, %s174, %s175
      %p179 = pneg %p173
      %p180 = scmp.eq.s32.totalorder %s27, 1
      %p181 = por %p179, %p180
      %p182 = scmp.ne.s32.totalorder %s174, %s177
      %p183 = scmp.eq.s32.totalorder %s27, 0
      %p184 = por %p182, %p183
      %p185 = scmp.ne.s32.totalorder %s174, %s177
      %p186 = scmp.eq.s32.totalorder %s32, 1
      %p187 = por %p185, %p186
      %p188 = scmp.ne.s32.totalorder %s177, %s178
      %p189 = scmp.eq.s32.totalorder %s32, 0
      %p190 = por %p188, %p189
      %p191 = scmp.ne.s32.totalorder %s177, %s178
      %p192 = scmp.eq.s32.totalorder %s33, 1
      %p193 = por %p191, %p192
      %p195 = scmp.ne.s32.totalorder %s178, %s194
      %p196 = scmp.eq.s32.totalorder %s33, 0
      %p197 = por %p195, %p196
      %s198 = ssub.s32 %s35, %s42
      %p199 = scmp.eq.s32.totalorder %s198, 0
      %s201 = sadd.s32 %s200, 1
      %s202 = scalar_select %p199, %s200, %s201
      %p205 = pneg %p199
      %p206 = scmp.eq.s32.totalorder %s27, 1
      %p207 = por %p205, %p206
      %p208 = scmp.ne.s32.totalorder %s200, %s203
      %p209 = scmp.eq.s32.totalorder %s27, 0
      %p210 = por %p208, %p209
      %p211 = scmp.ne.s32.totalorder %s200, %s203
      %p212 = scmp.eq.s32.totalorder %s32, 1
      %p213 = por %p211, %p212
      %p214 = scmp.ne.s32.totalorder %s203, %s204
      %p215 = scmp.eq.s32.totalorder %s32, 0
      %p216 = por %p214, %p215
      %p217 = scmp.ne.s32.totalorder %s203, %s204
      %p218 = scmp.eq.s32.totalorder %s33, 1
      %p219 = por %p217, %p218
      %p221 = scmp.ne.s32.totalorder %s204, %s220
      %p222 = scmp.eq.s32.totalorder %s33, 0
      %p223 = por %p221, %p222
      %s224 = ssub.s32 %s35, %s42
      %p225 = scmp.eq.s32.totalorder %s224, 0
      %s227 = sadd.s32 %s226, 1
      %s228 = scalar_select %p225, %s226, %s227
      %p231 = pneg %p225
      %p232 = scmp.eq.s32.totalorder %s27, 1
      %p233 = por %p231, %p232
      %p234 = scmp.ne.s32.totalorder %s226, %s229
      %p235 = scmp.eq.s32.totalorder %s27, 0
      %p236 = por %p234, %p235
      %p237 = scmp.ne.s32.totalorder %s226, %s229
      %p238 = scmp.eq.s32.totalorder %s32, 1
      %p239 = por %p237, %p238
      %p240 = scmp.ne.s32.totalorder %s229, %s230
      %p241 = scmp.eq.s32.totalorder %s32, 0
      %p242 = por %p240, %p241
      %p243 = scmp.ne.s32.totalorder %s229, %s230
      %p244 = scmp.eq.s32.totalorder %s33, 1
      %p245 = por %p243, %p244
      %p247 = scmp.ne.s32.totalorder %s230, %s246
      %p248 = scmp.eq.s32.totalorder %s33, 0
      %p249 = por %p247, %p248
      %s250 = ssub.s32 %s35, %s42
      %p251 = scmp.eq.s32.totalorder %s250, 0
      %s253 = sadd.s32 %s252, 1
      %s254 = scalar_select %p251, %s252, %s253
      %p257 = pneg %p251
      %p258 = scmp.eq.s32.totalorder %s27, 1
      %p259 = por %p257, %p258
      %p260 = scmp.ne.s32.totalorder %s252, %s255
      %p261 = scmp.eq.s32.totalorder %s27, 0
      %p262 = por %p260, %p261
      %p263 = scmp.ne.s32.totalorder %s252, %s255
      %p264 = scmp.eq.s32.totalorder %s32, 1
      %p265 = por %p263, %p264
      %p266 = scmp.ne.s32.totalorder %s255, %s256
      %p267 = scmp.eq.s32.totalorder %s32, 0
      %p268 = por %p266, %p267
      %p269 = scmp.ne.s32.totalorder %s255, %s256
      %p270 = scmp.eq.s32.totalorder %s33, 1
      %p271 = por %p269, %p270
      %p273 = scmp.ne.s32.totalorder %s256, %s272
      %p274 = scmp.eq.s32.totalorder %s33, 0
      %p275 = por %p273, %p274
      %s276 = ssub.s32 %s35, %s42
      %p277 = scmp.eq.s32.totalorder %s276, 0
      %s279 = sadd.s32 %s278, 1
      %s280 = scalar_select %p277, %s278, %s279
      %p283 = pneg %p277
      %p284 = scmp.eq.s32.totalorder %s27, 1
      %p285 = por %p283, %p284
      %p286 = scmp.ne.s32.totalorder %s278, %s281
      %p287 = scmp.eq.s32.totalorder %s27, 0
      %p288 = por %p286, %p287
      %p289 = scmp.ne.s32.totalorder %s278, %s281
      %p290 = scmp.eq.s32.totalorder %s32, 1
      %p291 = por %p289, %p290
      %p292 = scmp.ne.s32.totalorder %s281, %s282
      %p293 = scmp.eq.s32.totalorder %s32, 0
      %p294 = por %p292, %p293
      %p295 = scmp.ne.s32.totalorder %s281, %s282
      %p296 = scmp.eq.s32.totalorder %s33, 1
      %p297 = por %p295, %p296
      %p299 = scmp.ne.s32.totalorder %s282, %s298
      %p300 = scmp.eq.s32.totalorder %s33, 0
      %p301 = por %p299, %p300
      %s302 = ssub.s32 %s35, %s42
      %p303 = scmp.eq.s32.totalorder %s302, 0
      %s305 = sadd.s32 %s304, 1
      %s306 = scalar_select %p303, %s304, %s305
      %p309 = pneg %p303
      %p310 = scmp.eq.s32.totalorder %s27, 1
      %p311 = por %p309, %p310
      %p312 = scmp.ne.s32.totalorder %s304, %s307
      %p313 = scmp.eq.s32.totalorder %s27, 0
      %p314 = por %p312, %p313
      %p315 = scmp.ne.s32.totalorder %s304, %s307
      %p316 = scmp.eq.s32.totalorder %s32, 1
      %p317 = por %p315, %p316
      %p318 = scmp.ne.s32.totalorder %s307, %s308
      %p319 = scmp.eq.s32.totalorder %s32, 0
      %p320 = por %p318, %p319
      %p321 = scmp.ne.s32.totalorder %s307, %s308
      %p322 = scmp.eq.s32.totalorder %s33, 1
      %p323 = por %p321, %p322
      %p325 = scmp.ne.s32.totalorder %s308, %s324
      %p326 = scmp.eq.s32.totalorder %s33, 0
      %p327 = por %p325, %p326
      %s328 = ssub.s32 %s35, %s42
      %p329 = scmp.eq.s32.totalorder %s328, 0
      %s331 = sadd.s32 %s330, 1
      %s332 = scalar_select %p329, %s330, %s331
      %p335 = pneg %p329
      %p336 = scmp.eq.s32.totalorder %s27, 1
      %p337 = por %p335, %p336
      %p338 = scmp.ne.s32.totalorder %s330, %s333
      %p339 = scmp.eq.s32.totalorder %s27, 0
      %p340 = por %p338, %p339
      %p341 = scmp.ne.s32.totalorder %s330, %s333
      %p342 = scmp.eq.s32.totalorder %s32, 1
      %p343 = por %p341, %p342
      %p344 = scmp.ne.s32.totalorder %s333, %s334
      %p345 = scmp.eq.s32.totalorder %s32, 0
      %p346 = por %p344, %p345
      %p347 = scmp.ne.s32.totalorder %s333, %s334
      %p348 = scmp.eq.s32.totalorder %s33, 1
      %p349 = por %p347, %p348
      %p351 = scmp.ne.s32.totalorder %s334, %s350
      %p352 = scmp.eq.s32.totalorder %s33, 0
      %p353 = por %p351, %p352
      %s355 = sadd.s32 %s354, 1
      %p358 = scmp.eq.s32.totalorder %s27, 1
      %p359 = scmp.ne.s32.totalorder %s354, %s356
      %p360 = scmp.eq.s32.totalorder %s27, 0
      %p361 = por %p359, %p360
      %p362 = scmp.ne.s32.totalorder %s354, %s356
      %p363 = scmp.eq.s32.totalorder %s32, 1
      %p364 = por %p362, %p363
      %p365 = scmp.ne.s32.totalorder %s356, %s357
      %p366 = scmp.eq.s32.totalorder %s32, 0
      %p367 = por %p365, %p366
      %p368 = scmp.ne.s32.totalorder %s356, %s357
      %p369 = scmp.eq.s32.totalorder %s33, 1
      %p370 = por %p368, %p369
      %p372 = scmp.ne.s32.totalorder %s357, %s371
      %p373 = scmp.eq.s32.totalorder %s33, 0
      %p374 = por %p372, %p373
      %s376 = sadd.s32 %s375, 1
      %p379 = scmp.eq.s32.totalorder %s27, 1
      %p380 = scmp.ne.s32.totalorder %s375, %s377
      %p381 = scmp.eq.s32.totalorder %s27, 0
      %p382 = por %p380, %p381
      %p383 = scmp.ne.s32.totalorder %s375, %s377
      %p384 = scmp.eq.s32.totalorder %s32, 1
      %p385 = por %p383, %p384
      %p386 = scmp.ne.s32.totalorder %s377, %s378
      %p387 = scmp.eq.s32.totalorder %s32, 0
      %p388 = por %p386, %p387
      %p389 = scmp.ne.s32.totalorder %s377, %s378
      %p390 = scmp.eq.s32.totalorder %s33, 1
      %p391 = por %p389, %p390
      %p393 = scmp.ne.s32.totalorder %s378, %s392
      %p394 = scmp.eq.s32.totalorder %s33, 0
      %p395 = por %p393, %p394
      %s396 = ssub.s32 %s34, %s46
      %p397 = scmp.eq.s32.totalorder %s396, 0
      %s399 = sadd.s32 %s398, 1
      %s400 = scalar_select %p397, %s398, %s399
      %p403 = pneg %p397
      %p404 = scmp.eq.s32.totalorder %s27, 1
      %p405 = por %p403, %p404
      %p406 = scmp.ne.s32.totalorder %s398, %s401
      %p407 = scmp.eq.s32.totalorder %s27, 0
      %p408 = por %p406, %p407
      %p409 = scmp.ne.s32.totalorder %s398, %s401
      %p410 = scmp.eq.s32.totalorder %s32, 1
      %p411 = por %p409, %p410
      %p412 = scmp.ne.s32.totalorder %s401, %s402
      %p413 = scmp.eq.s32.totalorder %s32, 0
      %p414 = por %p412, %p413
      %p415 = scmp.ne.s32.totalorder %s401, %s402
      %p416 = scmp.eq.s32.totalorder %s33, 1
      %p417 = por %p415, %p416
      %p419 = scmp.ne.s32.totalorder %s402, %s418
      %p420 = scmp.eq.s32.totalorder %s33, 0
      %p421 = por %p419, %p420
      %p422 = scmp.le.s32.totalorder 1, %s27
      %p423 = scmp.lt.s32.totalorder %s27, 3
      %p424 = pnand %p422, %p423
      %p425 = pneg %p424
      // Predicated region
      $region9: #{tpu_custom_call.1} parent=5 // pred_check
        _
      $region10: #{tpu_custom_call.1} parent=5 // pred_check_branch
        %427 = sbr.rel (%p424) target = $region12
      $region11: #{tpu_custom_call.1} parent=5 // pred_region
        %s428 = ssub.s32 %s27, 1
        // Predicated region
        $region13: #{tpu_custom_call.1} parent=11 // pred_check
          %p429 = pneg %p65
        $region14: #{tpu_custom_call.1} parent=11 // pred_check_branch
          %431 = sbr.rel (%p429) target = $region16
        $region15: #{tpu_custom_call.1} parent=11 // pred_region
          %s432 = smul.u32 2, %s36
          %p433 = scmp.lt.s32.totalorder %s432, 1
          %s434 = scalar_select %p433, %s432, 1
          %s435 = smul.addr %s434, 2
          %s436 = smul.addr %s435, 8
          %s437 = scalar_lea.vmem %s0, %s436
          %s438 = smul.u32 2, %s36
        $region16: #{tpu_custom_call.1} parent=11 // pred_fallthru
          _
        // Predicated region
        $region17: #{tpu_custom_call.1} parent=11 // pred_check
          %p439 = pneg %p86
        $region18: #{tpu_custom_call.1} parent=11 // pred_check_branch
          %441 = sbr.rel (%p439) target = $region20
        $region19: #{tpu_custom_call.1} parent=11 // pred_region
          _
        $region20: #{tpu_custom_call.1} parent=11 // pred_fallthru
          _
        // Predicated region
        $region21: #{tpu_custom_call.1} parent=11 // pred_check
          %p442 = pneg %p367
        $region22: #{tpu_custom_call.1} parent=11 // pred_check_branch
          %444 = sbr.rel (%p442) target = $region24
        $region23: #{tpu_custom_call.1} parent=11 // pred_region
          _
        $region24: #{tpu_custom_call.1} parent=11 // pred_fallthru
          _
        // Predicated region
        $region25: #{tpu_custom_call.1} parent=11 // pred_check
          %p445 = pneg %p388
        $region26: #{tpu_custom_call.1} parent=11 // pred_check_branch
          %447 = sbr.rel (%p445) target = $region28
        $region27: #{tpu_custom_call.1} parent=11 // pred_region
          _
        $region28: #{tpu_custom_call.1} parent=11 // pred_fallthru
          _
      $region12: #{tpu_custom_call.1} parent=5 // pred_fallthru
        _
      %p448 = scmp.lt.s32.totalorder %s27, 2
      // Predicated region
      $region29: #{tpu_custom_call.1} parent=5 // pred_check
        %p449 = pneg %p448
      $region30: #{tpu_custom_call.1} parent=5 // pred_check_branch
        %451 = sbr.rel (%p449) target = $region32
      $region31: #{tpu_custom_call.1} parent=5 // pred_region
        // Predicated region
        $region33: #{tpu_custom_call.1} parent=31 // pred_check
          %p452 = pneg %p106
        $region34: #{tpu_custom_call.1} parent=31 // pred_check_branch
          %454 = sbr.rel (%p452) target = $region36
        $region35: #{tpu_custom_call.1} parent=31 // pred_region
          %p455 = scmp.lt.s32.totalorder %s35, 1
          %s456 = scalar_select %p455, %s35, 1
          %s457 = scalar_lea.vmem %s2, %s456
        $region36: #{tpu_custom_call.1} parent=31 // pred_fallthru
          _
        // Predicated region
        $region37: #{tpu_custom_call.1} parent=31 // pred_check
          %p458 = pneg %p132
        $region38: #{tpu_custom_call.1} parent=31 // pred_check_branch
          %460 = sbr.rel (%p458) target = $region40
        $region39: #{tpu_custom_call.1} parent=31 // pred_region
          %p461 = scmp.lt.s32.totalorder %s35, 1
          %s462 = scalar_select %p461, %s35, 1
          %s463 = scalar_lea.vmem %s3, %s462
        $region40: #{tpu_custom_call.1} parent=31 // pred_fallthru
          _
        // Predicated region
        $region41: #{tpu_custom_call.1} parent=31 // pred_check
          %p464 = pneg %p158
        $region42: #{tpu_custom_call.1} parent=31 // pred_check_branch
          %466 = sbr.rel (%p464) target = $region44
        $region43: #{tpu_custom_call.1} parent=31 // pred_region
          %p467 = scmp.lt.s32.totalorder %s35, 1
          %s468 = scalar_select %p467, %s35, 1
          %s469 = smul.addr %s468, 4
          %s470 = smul.addr %s469, 4
          %s471 = scalar_lea.vmem %s4, %s470
        $region44: #{tpu_custom_call.1} parent=31 // pred_fallthru
          _
        // Predicated region
        $region45: #{tpu_custom_call.1} parent=31 // pred_check
          %p472 = pneg %p184
        $region46: #{tpu_custom_call.1} parent=31 // pred_check_branch
          %474 = sbr.rel (%p472) target = $region48
        $region47: #{tpu_custom_call.1} parent=31 // pred_region
          %p475 = scmp.lt.s32.totalorder %s35, 1
          %s476 = scalar_select %p475, %s35, 1
          %s477 = smul.addr %s476, 4
          %s478 = smul.addr %s477, 4
          %s479 = scalar_lea.vmem %s5, %s478
        $region48: #{tpu_custom_call.1} parent=31 // pred_fallthru
          _
        // Predicated region
        $region49: #{tpu_custom_call.1} parent=31 // pred_check
          %p480 = pneg %p210
        $region50: #{tpu_custom_call.1} parent=31 // pred_check_branch
          %482 = sbr.rel (%p480) target = $region52
        $region51: #{tpu_custom_call.1} parent=31 // pred_region
          %s483 = sand.u32 %s200, 1
          %s484 = scalar_lea.sflag [#allocation5], %s483
          %s485 = sand.u32 %s200, 1
          %s486 = scalar_lea.vmem [#allocation4], %s485
          %s488 = ssub.s32 16, 16
          %489 = vsyncadd %s484, %s488
          %s490 = smul.addr %s35, 16
          %s491 = scalar_lea.hbm %s6, %s490
          %s493 = sshll.u32 %s486, 4
          %s494 = int_to_ptr.vmem [resolvable:$true] %s493
          %496 = dma.hbm_to_vmem [thread:$0]  %s491, 16, %s494, %s484
        $region52: #{tpu_custom_call.1} parent=31 // pred_fallthru
          _
        // Predicated region
        $region53: #{tpu_custom_call.1} parent=31 // pred_check
          %p497 = pneg %p236
        $region54: #{tpu_custom_call.1} parent=31 // pred_check_branch
          %499 = sbr.rel (%p497) target = $region56
        $region55: #{tpu_custom_call.1} parent=31 // pred_region
          %s500 = sand.u32 %s27, 1
          %s501 = scalar_lea.sflag [#allocation8], %s500
          %s502 = sand.u32 %s226, 1
          %s503 = scalar_lea.vmem [#allocation7], %s502
          %s505 = ssub.s32 16, 16
          %506 = vsyncadd %s501, %s505
          %s507 = smul.addr %s35, 16
          %s508 = scalar_lea.hbm %s7, %s507
          %s510 = sshll.u32 %s503, 4
          %s511 = int_to_ptr.vmem [resolvable:$true] %s510
          %513 = dma.hbm_to_vmem [thread:$0]  %s508, 16, %s511, %s501
        $region56: #{tpu_custom_call.1} parent=31 // pred_fallthru
          _
        // Predicated region
        $region57: #{tpu_custom_call.1} parent=31 // pred_check
          %p514 = pneg %p262
        $region58: #{tpu_custom_call.1} parent=31 // pred_check_branch
          %516 = sbr.rel (%p514) target = $region60
        $region59: #{tpu_custom_call.1} parent=31 // pred_region
          %p517 = scmp.lt.s32.totalorder %s35, 1
          %s518 = scalar_select %p517, %s35, 1
          %s519 = smul.addr %s518, 4
          %s520 = smul.addr %s519, 4
          %s521 = scalar_lea.vmem %s8, %s520
        $region60: #{tpu_custom_call.1} parent=31 // pred_fallthru
          _
        // Predicated region
        $region61: #{tpu_custom_call.1} parent=31 // pred_check
          %p522 = pneg %p288
        $region62: #{tpu_custom_call.1} parent=31 // pred_check_branch
          %524 = sbr.rel (%p522) target = $region64
        $region63: #{tpu_custom_call.1} parent=31 // pred_region
          %s525 = sand.u32 %s27, 1
          %s526 = scalar_lea.sflag [#allocation8], %s525
          %s527 = sand.u32 %s278, 1
          %s528 = scalar_lea.vmem [#allocation9], %s527
          %s530 = ssub.s32 16, 16
          %531 = vsyncadd %s526, %s530
          %s532 = smul.addr %s35, 16
          %s533 = scalar_lea.hbm %s9, %s532
          %s535 = sshll.u32 %s528, 4
          %s536 = int_to_ptr.vmem [resolvable:$true] %s535
          %538 = dma.hbm_to_vmem [thread:$0]  %s533, 16, %s536, %s526
        $region64: #{tpu_custom_call.1} parent=31 // pred_fallthru
          _
        // Predicated region
        $region65: #{tpu_custom_call.1} parent=31 // pred_check
          %p539 = pneg %p314
        $region66: #{tpu_custom_call.1} parent=31 // pred_check_branch
          %541 = sbr.rel (%p539) target = $region68
        $region67: #{tpu_custom_call.1} parent=31 // pred_region
          %p542 = scmp.lt.s32.totalorder %s35, 1
          %s543 = scalar_select %p542, %s35, 1
          %s544 = smul.addr %s543, 16
          %s545 = smul.addr %s544, 4
          %s546 = scalar_lea.vmem %s10, %s545
        $region68: #{tpu_custom_call.1} parent=31 // pred_fallthru
          _
        // Predicated region
        $region69: #{tpu_custom_call.1} parent=31 // pred_check
          %p547 = pneg %p340
        $region70: #{tpu_custom_call.1} parent=31 // pred_check_branch
          %549 = sbr.rel (%p547) target = $region72
        $region71: #{tpu_custom_call.1} parent=31 // pred_region
          %p550 = scmp.lt.s32.totalorder %s35, 1
          %s551 = scalar_select %p550, %s35, 1
          %s552 = scalar_lea.vmem %s11, %s551
        $region72: #{tpu_custom_call.1} parent=31 // pred_fallthru
          _
      $region32: #{tpu_custom_call.1} parent=5 // pred_fallthru
        _
      %p553 = scmp.le.s32.totalorder 1, %s27
      %p554 = scmp.lt.s32.totalorder %s27, 3
      %p555 = pnand %p553, %p554
      %p556 = pneg %p555
      // Predicated region
      $region73: #{tpu_custom_call.1} parent=5 // pred_check
        _
      $region74: #{tpu_custom_call.1} parent=5 // pred_check_branch
        %558 = sbr.rel (%p555) target = $region76
      $region75: #{tpu_custom_call.1} parent=5 // pred_region
        %s559 = ssub.s32 %s27, 1
        %s560 = sand.u32 %s203, 1
        %s561 = scalar_lea.sflag [#allocation5], %s560
        %s562 = sand.u32 %s203, 1
        %s563 = scalar_lea.vmem [#allocation4], %s562
        // Predicated region
        $region77: #{tpu_custom_call.1} parent=75 // pred_check
          %p564 = pneg %p216
        $region78: #{tpu_custom_call.1} parent=75 // pred_check_branch
          %566 = sbr.rel (%p564) target = $region80
        $region79: #{tpu_custom_call.1} parent=75 // pred_region
          %567 = dma.done %s561, 16
        $region80: #{tpu_custom_call.1} parent=75 // pred_fallthru
          _
        %s568 = sand.u32 %s32, 1
        %s569 = scalar_lea.sflag [#allocation8], %s568
        %s570 = sand.u32 %s229, 1
        %s571 = scalar_lea.vmem [#allocation7], %s570
        // Predicated region
        $region81: #{tpu_custom_call.1} parent=75 // pred_check
          %p572 = pneg %p242
        $region82: #{tpu_custom_call.1} parent=75 // pred_check_branch
          %574 = sbr.rel (%p572) target = $region84
        $region83: #{tpu_custom_call.1} parent=75 // pred_region
          %575 = dma.done %s569, 16
        $region84: #{tpu_custom_call.1} parent=75 // pred_fallthru
          _
        %s576 = sand.u32 %s32, 1
        %s577 = scalar_lea.sflag [#allocation8], %s576
        %s578 = sand.u32 %s281, 1
        %s579 = scalar_lea.vmem [#allocation9], %s578
        // Predicated region
        $region85: #{tpu_custom_call.1} parent=75 // pred_check
          %p580 = pneg %p294
        $region86: #{tpu_custom_call.1} parent=75 // pred_check_branch
          %582 = sbr.rel (%p580) target = $region88
        $region87: #{tpu_custom_call.1} parent=75 // pred_region
          %583 = dma.done %s577, 16
        $region88: #{tpu_custom_call.1} parent=75 // pred_fallthru
          _
        %s584 = smul.u32 2, %s36
        %p585 = scmp.lt.s32.totalorder %s584, 1
        %s586 = scalar_select %p585, %s584, 1
        %s587 = smul.addr %s586, 2
        %s588 = smul.addr %s587, 8
        %s589 = scalar_lea.vmem %s0, %s588
        %p590 = pneg %p65
        %p591 = pneg %p62
        %p592 = pneg %p86
        %p593 = pneg %p83
        %p594 = scmp.lt.s32.totalorder %s37, 1
        %s595 = scalar_select %p594, %s37, 1
        %s596 = scalar_lea.vmem %s2, %s595
        %p597 = pneg %p112
        %p598 = pneg %p109
        %p599 = scmp.lt.s32.totalorder %s37, 1
        %s600 = scalar_select %p599, %s37, 1
        %s601 = scalar_lea.vmem %s3, %s600
        %p602 = pneg %p138
        %p603 = pneg %p135
        %p604 = scmp.lt.s32.totalorder %s37, 1
        %s605 = scalar_select %p604, %s37, 1
        %s606 = smul.addr %s605, 4
        %s607 = smul.addr %s606, 4
        %s608 = scalar_lea.vmem %s4, %s607
        %p609 = pneg %p164
        %p610 = pneg %p161
        %p611 = scmp.lt.s32.totalorder %s37, 1
        %s612 = scalar_select %p611, %s37, 1
        %s613 = smul.addr %s612, 4
        %s614 = smul.addr %s613, 4
        %s615 = scalar_lea.vmem %s5, %s614
        %p616 = pneg %p190
        %p617 = pneg %p187
        %s618 = sand.u32 %s203, 1
        %s619 = scalar_lea.sflag [#allocation5], %s618
        %s620 = sand.u32 %s203, 1
        %s621 = scalar_lea.vmem [#allocation4], %s620
        %p622 = pneg %p216
        %p623 = pneg %p213
        %s624 = sand.u32 %s32, 1
        %s625 = scalar_lea.sflag [#allocation8], %s624
        %s626 = sand.u32 %s229, 1
        %s627 = scalar_lea.vmem [#allocation7], %s626
        %p628 = pneg %p242
        %p629 = pneg %p239
        %p630 = scmp.lt.s32.totalorder %s37, 1
        %s631 = scalar_select %p630, %s37, 1
        %s632 = smul.addr %s631, 4
        %s633 = smul.addr %s632, 4
        %s634 = scalar_lea.vmem %s8, %s633
        %p635 = pneg %p268
        %p636 = pneg %p265
        %s637 = sand.u32 %s32, 1
        %s638 = scalar_lea.sflag [#allocation8], %s637
        %s639 = sand.u32 %s281, 1
        %s640 = scalar_lea.vmem [#allocation9], %s639
        %p641 = pneg %p294
        %p642 = pneg %p291
        %p643 = scmp.lt.s32.totalorder %s37, 1
        %s644 = scalar_select %p643, %s37, 1
        %s645 = smul.addr %s644, 16
        %s646 = smul.addr %s645, 4
        %s647 = scalar_lea.vmem %s10, %s646
        %p648 = pneg %p320
        %p649 = pneg %p317
        %p650 = scmp.lt.s32.totalorder %s37, 1
        %s651 = scalar_select %p650, %s37, 1
        %s652 = scalar_lea.vmem %s11, %s651
        %p653 = pneg %p346
        %p654 = pneg %p343
        %p655 = pneg %p367
        %p656 = pneg %p364
        %p657 = pneg %p388
        %p658 = pneg %p385
        %p659 = pneg %p414
        %p660 = pneg %p411
        %s661 = smul.u32 2, %s36
        %p662 = scmp.lt.s32.totalorder %s661, 1
        %s663 = scalar_select %p662, %s661, 1
        %s664 = smul.addr %s663, 2
        %s665 = smul.addr %s664, 8
        %s666 = scalar_lea.vmem %s0, %s665
        %s667 = smul.u32 2, %s36
        %p668 = scmp.lt.s32.totalorder %s37, 1
        %s669 = scalar_select %p668, %s37, 1
        %s670 = scalar_lea.vmem %s2, %s669
        %p671 = scmp.lt.s32.totalorder %s37, 1
        %s672 = scalar_select %p671, %s37, 1
        %s673 = scalar_lea.vmem %s3, %s672
        %p674 = scmp.lt.s32.totalorder %s37, 1
        %s675 = scalar_select %p674, %s37, 1
        %s676 = smul.addr %s675, 4
        %s677 = smul.addr %s676, 4
        %s678 = scalar_lea.vmem %s4, %s677
        %p679 = scmp.lt.s32.totalorder %s37, 1
        %s680 = scalar_select %p679, %s37, 1
        %s681 = smul.addr %s680, 4
        %s682 = smul.addr %s681, 4
        %s683 = scalar_lea.vmem %s5, %s682
        %p684 = scmp.lt.s32.totalorder %s37, 1
        %s685 = scalar_select %p684, %s37, 1
        %s686 = smul.addr %s685, 4
        %s687 = smul.addr %s686, 4
        %s688 = scalar_lea.vmem %s8, %s687
        %p689 = scmp.lt.s32.totalorder %s37, 1
        %s690 = scalar_select %p689, %s37, 1
        %s691 = smul.addr %s690, 16
        %s692 = smul.addr %s691, 4
        %s693 = scalar_lea.vmem %s10, %s692
        %p694 = scmp.lt.s32.totalorder %s37, 1
        %s695 = scalar_select %p694, %s37, 1
        %s696 = scalar_lea.vmem %s11, %s695
        %s697 = smul.u32 2, %s36
        %p699 = scmp.eq.s32.totalorder %s37, 0
        // Predicated region
        $region89: #{tpu_custom_call.1} parent=75 // pred_check
          %p700 = pneg %p699
        $region90: #{tpu_custom_call.1} parent=75 // pred_check_branch
          %702 = sbr.rel (%p700) target = $region92
        $region91: #{tpu_custom_call.1} parent=75 // pred_region
          %v703 = vld [vmem:[%s666] sm:$0xff]
          %v704 = vld [vmem:[%s666 + $0x8] sm:$0xff]
          %v705 = vld [vmem:[%s666 + $0x10] sm:$0xff]
          %v706 = vld [vmem:[%s666 + $0x18] sm:$0xff]
          %v707 = vld [vmem:[%s1] sm:$0xff]
          %v708 = vld [vmem:[%s1 + $0x8] sm:$0xff]
          %v709 = vadd.f32 %v703, %v707
          %v710 = vadd.f32 %v704, %v708
          %v711 = vadd.f32 %v705, %v707
          %v712 = vadd.f32 %v706, %v708
          %vm713 = vcmask 261120
          %714 = vst.msk [vmem:[#allocation2] sm:$0xff] %vm713, %v709
          %715 = vst.msk [vmem:[#allocation2 + $0x8] sm:$0xff] %vm713, %v710
          %716 = vst.msk [vmem:[#allocation2 + $0x10] sm:$0xff] %vm713, %v711
          %717 = vst.msk [vmem:[#allocation2 + $0x18] sm:$0xff] %vm713, %v712
        $region92: #{tpu_custom_call.1} parent=75 // pred_fallthru
          _
        %v718 = vld [vmem:[#allocation2] sm:$0xff]
        %v719 = vld [vmem:[#allocation2 + $0x8] sm:$0xff]
        %v720 = vld [vmem:[#allocation2 + $0x10] sm:$0xff]
        %v721 = vld [vmem:[#allocation2 + $0x18] sm:$0xff]
        %v722 = vld [vmem:[%s670] sm:$0x1]
        %v723 = vld [vmem:[%s673] sm:$0x1]
        %vm724 = vcmask 261120
        %v725 = vsel %vm724, %v718, 0.0
        %726 = vadd.xlane.f32.xlu0 %v725
        %v727 = vpop.xlane.xlu0 %726
        %v728 = vsel %vm724, %v719, 0.0
        %729 = vadd.xlane.f32.xlu0 %v728
        %v730 = vpop.xlane.xlu0 %729
        %v731 = vsel %vm724, %v720, 0.0
        %732 = vadd.xlane.f32.xlu0 %v731
        %v733 = vpop.xlane.xlu0 %732
        %v734 = vsel %vm724, %v721, 0.0
        %735 = vadd.xlane.f32.xlu0 %v734
        %v736 = vpop.xlane.xlu0 %735
        %v737 = vrcp.pop 32.0
        %v738 = vmul.f32 %v727, %v737
        %v739 = vmul.f32 %v730, %v737
        %v740 = vmul.f32 %v733, %v737
        %v741 = vmul.f32 %v736, %v737
        %v742 = vsub.f32 %v718, %v738
        %v743 = vsub.f32 %v719, %v739
        %v744 = vsub.f32 %v720, %v740
        %v745 = vsub.f32 %v721, %v741
        %v746 = vmul.f32 %v742, %v742
        %v747 = vmul.f32 %v743, %v743
        %v748 = vmul.f32 %v744, %v744
        %v749 = vmul.f32 %v745, %v745
        %v750 = vsel %vm724, %v746, 0.0
        %751 = vadd.xlane.f32.xlu0 %v750
        %v752 = vpop.xlane.xlu0 %751
        %v753 = vsel %vm724, %v747, 0.0
        %754 = vadd.xlane.f32.xlu0 %v753
        %v755 = vpop.xlane.xlu0 %754
        %v756 = vsel %vm724, %v748, 0.0
        %757 = vadd.xlane.f32.xlu0 %v756
        %v758 = vpop.xlane.xlu0 %757
        %v759 = vsel %vm724, %v749, 0.0
        %760 = vadd.xlane.f32.xlu0 %v759
        %v761 = vpop.xlane.xlu0 %760
        %v762 = vmul.f32 %v752, %v737
        %v763 = vmul.f32 %v755, %v737
        %v764 = vmul.f32 %v758, %v737
        %v765 = vmul.f32 %v761, %v737
        %v766 = vadd.f32 %v762, 1e-05
        %v767 = vadd.f32 %v763, 1e-05
        %v768 = vadd.f32 %v764, 1e-05
        %v769 = vadd.f32 %v765, 1e-05
        %v770 = vrsqrt.pop %v766
        %v771 = vrsqrt.pop %v767
        %v772 = vrsqrt.pop %v768
        %v773 = vrsqrt.pop %v769
        %v774 = vmul.f32 %v742, %v770
        %v775 = vmul.f32 %v743, %v771
        %v776 = vmul.f32 %v744, %v772
        %v777 = vmul.f32 %v745, %v773
        %v779 = vlaneseq
        %v780 = vshrl.u32 %v779, 7
        %v781 = vsub.s32 0, %v780
        %v782 = vrot.slane %v722, %v781
        %v784 = vmul.f32 %v774, %v782
        %v785 = vmul.f32 %v775, %v782
        %v786 = vmul.f32 %v776, %v782
        %v787 = vmul.f32 %v777, %v782
        %v789 = vlaneseq
        %v790 = vshrl.u32 %v789, 7
        %v791 = vsub.s32 0, %v790
        %v792 = vrot.slane %v723, %v791
        %v794 = vadd.f32 %v784, %v792
        %v795 = vadd.f32 %v785, %v792
        %v796 = vadd.f32 %v786, %v792
        %v797 = vadd.f32 %v787, %v792
        %v798 = vpack.c.bf16 %v795, %v794
        %v799 = vpack.c.bf16 %v797, %v796
        %v800 = vld [vmem:[%s678] sm:$0xf]
        %v801 = vld [vmem:[%s678 + $0x4] sm:$0xf]
        %v802 = vld [vmem:[%s678 + $0x8] sm:$0xf]
        %v803 = vld [vmem:[%s678 + $0xc] sm:$0xf]
        %v808 = vunpack.c.l.b16 %v800
        %v809 = vunpack.c.l.b16 %v801
        %v810 = vunpack.c.l.b16 %v802
        %v811 = vunpack.c.l.b16 %v803
        %v812 = vpack.c.b16 %v809, %v808
        %v813 = vpack.c.b16 %v811, %v810
        %v817 = vsel %vm724, %v798, 0
        %v820 = vsel %vm724, %v799, 0
        %822 = vmatprep.subr.bf16.mxu0 0
        %823 = vmatpush1.bf16.msra.mxu0 %v812
        %824 = vmatprep.subr.bf16.mxu0 0
        %825 = vmatpush1.bf16.msra.mxu0 %v813
        %826 = vmatprep.subr.bf16.mxu0 0
        %827 = vmatpush1.bf16.msra.mxu0 0
        %828 = vmatprep.subr.bf16.mxu0 0
        %829 = vmatpush1.bf16.msra.mxu0 0
        %830 = vmatprep.subr.bf16.mxu0 0
        %831 = vmatpush1.bf16.msra.mxu0 0
        %832 = vmatprep.subr.bf16.mxu0 0
        %833 = vmatpush1.bf16.msra.mxu0 0
        %834 = vmatprep.subr.bf16.mxu0 0
        %835 = vmatpush1.bf16.msra.mxu0 0
        %836 = vmatprep.subr.bf16.mxu0 0
        %837 = vmatpush1.bf16.msra.mxu0 0
        %838 = vmatprep.subr.bf16.mxu0 0
        %839 = vmatpush1.bf16.msra.mxu0 0
        %840 = vmatprep.subr.bf16.mxu0 0
        %841 = vmatpush1.bf16.msra.mxu0 0
        %842 = vmatprep.subr.bf16.mxu0 0
        %843 = vmatpush1.bf16.msra.mxu0 0
        %844 = vmatprep.subr.bf16.mxu0 0
        %845 = vmatpush1.bf16.msra.mxu0 0
        %846 = vmatprep.subr.bf16.mxu0 0
        %847 = vmatpush1.bf16.msra.mxu0 0
        %848 = vmatprep.subr.bf16.mxu0 0
        %849 = vmatpush1.bf16.msra.mxu0 0
        %850 = vmatprep.subr.bf16.mxu0 0
        %851 = vmatpush1.bf16.msra.mxu0 0
        %852 = vmatprep.subr.bf16.mxu0 0
        %853 = vmatpush1.bf16.msra.mxu0 0
        %854 = vmatprep.mubr.bf16.mxu0 0
        %855 = vmatmul.mubr.bf16.gmra.mrb[0].mxu0 %v817
        %v856 = vpop.f32.mrb[0].mxu0
        %v857 = vadd.f32 0.0, %v856
        %v858 = vpop.f32.mrb[0].mxu0
        %v859 = vpop.f32.mrb[0].mxu0
        %v860 = vadd.f32 0.0, %v859
        %v861 = vpop.f32.mrb[0].mxu0
        %862 = vmatprep.mubr.bf16.mxu0 0
        %863 = vmatmul.mubr.bf16.gmra.mrb[0].mxu0 %v820
        %v864 = vpop.f32.mrb[0].mxu0
        %v865 = vadd.f32 0.0, %v864
        %v866 = vpop.f32.mrb[0].mxu0
        %v867 = vpop.f32.mrb[0].mxu0
        %v868 = vadd.f32 0.0, %v867
        %v869 = vpop.f32.mrb[0].mxu0
        %870 = vdwg.mxu0
        %v871 = vpack.c.bf16 %v860, %v857
        %v872 = vpack.c.bf16 %v868, %v865
        %874 = vrot.lane.b32.xlu0 %v871, 96
        %v875 = vpop.permute.xlu0 %874
        %vm876 = vcmask 64512
        %v878 = vsel %vm876, %v871, 0
        %v881 = vsel %vm876, %v875, 0
        %883 = vmatprep.subr.bf16.mxu0 0
        %884 = vmatpush1.bf16.xpose.msra.mxu0 %v881
        %885 = vmatprep.subr.bf16.mxu0 0
        %886 = vmatpush1.bf16.xpose.msra.mxu0 0
        %887 = vmatprep.subr.bf16.mxu0 0
        %888 = vmatpush1.bf16.xpose.msra.mxu0 0
        %889 = vmatprep.subr.bf16.mxu0 0
        %890 = vmatpush1.bf16.xpose.msra.mxu0 0
        %891 = vmatprep.subr.bf16.mxu0 0
        %892 = vmatpush1.bf16.xpose.msra.mxu0 0
        %893 = vmatprep.subr.bf16.mxu0 0
        %894 = vmatpush1.bf16.xpose.msra.mxu0 0
        %895 = vmatprep.subr.bf16.mxu0 0
        %896 = vmatpush1.bf16.xpose.msra.mxu0 0
        %897 = vmatprep.subr.bf16.mxu0 0
        %898 = vmatpush1.bf16.xpose.msra.mxu0 0
        %899 = vmatprep.subr.bf16.mxu0 0
        %900 = vmatpush1.bf16.xpose.msra.mxu0 0
        %901 = vmatprep.subr.bf16.mxu0 0
        %902 = vmatpush1.bf16.xpose.msra.mxu0 0
        %903 = vmatprep.subr.bf16.mxu0 0
        %904 = vmatpush1.bf16.xpose.msra.mxu0 0
        %905 = vmatprep.subr.bf16.mxu0 0
        %906 = vmatpush1.bf16.xpose.msra.mxu0 0
        %907 = vmatprep.subr.bf16.mxu0 0
        %908 = vmatpush1.bf16.xpose.msra.mxu0 0
        %909 = vmatprep.subr.bf16.mxu0 0
        %910 = vmatpush1.bf16.xpose.msra.mxu0 0
        %911 = vmatprep.subr.bf16.mxu0 0
        %912 = vmatpush1.bf16.xpose.msra.mxu0 0
        %913 = vmatprep.subr.bf16.mxu0 0
        %914 = vmatpush1.bf16.xpose.msra.mxu0 0
        %915 = vmatprep.mubr.bf16.mxu0 0
        %916 = vmatmul.mubr.bf16.gmra.mrb[0].mxu0 %v878
        %v917 = vpop.f32.mrb[0].mxu0
        %v918 = vadd.f32 0.0, %v917
        %v919 = vpop.f32.mrb[0].mxu0
        %v920 = vpop.f32.mrb[0].mxu0
        %v921 = vadd.f32 0.0, %v920
        %v922 = vpop.f32.mrb[0].mxu0
        %923 = vdwg.mxu0
        %925 = vrot.lane.b32.xlu0 %v872, 96
        %v926 = vpop.permute.xlu0 %925
        %v928 = vsel %vm876, %v872, 0
        %v931 = vsel %vm876, %v926, 0
        %933 = vmatprep.subr.bf16.mxu0 0
        %934 = vmatpush1.bf16.xpose.msra.mxu0 %v931
        %935 = vmatprep.subr.bf16.mxu0 0
        %936 = vmatpush1.bf16.xpose.msra.mxu0 0
        %937 = vmatprep.subr.bf16.mxu0 0
        %938 = vmatpush1.bf16.xpose.msra.mxu0 0
        %939 = vmatprep.subr.bf16.mxu0 0
        %940 = vmatpush1.bf16.xpose.msra.mxu0 0
        %941 = vmatprep.subr.bf16.mxu0 0
        %942 = vmatpush1.bf16.xpose.msra.mxu0 0
        %943 = vmatprep.subr.bf16.mxu0 0
        %944 = vmatpush1.bf16.xpose.msra.mxu0 0
        %945 = vmatprep.subr.bf16.mxu0 0
        %946 = vmatpush1.bf16.xpose.msra.mxu0 0
        %947 = vmatprep.subr.bf16.mxu0 0
        %948 = vmatpush1.bf16.xpose.msra.mxu0 0
        %949 = vmatprep.subr.bf16.mxu0 0
        %950 = vmatpush1.bf16.xpose.msra.mxu0 0
        %951 = vmatprep.subr.bf16.mxu0 0
        %952 = vmatpush1.bf16.xpose.msra.mxu0 0
        %953 = vmatprep.subr.bf16.mxu0 0
        %954 = vmatpush1.bf16.xpose.msra.mxu0 0
        %955 = vmatprep.subr.bf16.mxu0 0
        %956 = vmatpush1.bf16.xpose.msra.mxu0 0
        %957 = vmatprep.subr.bf16.mxu0 0
        %958 = vmatpush1.bf16.xpose.msra.mxu0 0
        %959 = vmatprep.subr.bf16.mxu0 0
        %960 = vmatpush1.bf16.xpose.msra.mxu0 0
        %961 = vmatprep.subr.bf16.mxu0 0
        %962 = vmatpush1.bf16.xpose.msra.mxu0 0
        %963 = vmatprep.subr.bf16.mxu0 0
        %964 = vmatpush1.bf16.xpose.msra.mxu0 0
        %965 = vmatprep.mubr.bf16.mxu0 0
        %966 = vmatmul.mubr.bf16.gmra.mrb[0].mxu0 %v928
        %v967 = vpop.f32.mrb[0].mxu0
        %v968 = vadd.f32 0.0, %v967
        %v969 = vpop.f32.mrb[0].mxu0
        %v970 = vpop.f32.mrb[0].mxu0
        %v971 = vadd.f32 0.0, %v970
        %v972 = vpop.f32.mrb[0].mxu0
        %973 = vdwg.mxu0
        %vm974 = vcmask 130048
        %v975 = vsel %vm974, %v918, -inf
        %976 = vmax.xlane.f32.xlu0 %v975
        %v977 = vpop.xlane.xlu0 %976
        %v978 = vsel %vm974, %v921, -inf
        %979 = vmax.xlane.f32.xlu0 %v978
        %v980 = vpop.xlane.xlu0 %979
        %v981 = vsel %vm974, %v968, -inf
        %982 = vmax.xlane.f32.xlu0 %v981
        %v983 = vpop.xlane.xlu0 %982
        %v984 = vsel %vm974, %v971, -inf
        %985 = vmax.xlane.f32.xlu0 %v984
        %v986 = vpop.xlane.xlu0 %985
        %v987 = vsub.f32 %v918, %v977
        %v988 = vsub.f32 %v921, %v980
        %v989 = vsub.f32 %v968, %v983
        %v990 = vsub.f32 %v971, %v986
        %v991 = vmul.f32 %v987, 1.442695
        %v992 = vpow.pop %v991
        %v993 = vmul.f32 %v988, 1.442695
        %v994 = vpow.pop %v993
        %v995 = vmul.f32 %v989, 1.442695
        %v996 = vpow.pop %v995
        %v997 = vmul.f32 %v990, 1.442695
        %v998 = vpow.pop %v997
        %v999 = vsel %vm974, %v992, 0.0
        %1000 = vadd.xlane.f32.xlu0 %v999
        %v1001 = vpop.xlane.xlu0 %1000
        %v1002 = vsel %vm974, %v994, 0.0
        %1003 = vadd.xlane.f32.xlu0 %v1002
        %v1004 = vpop.xlane.xlu0 %1003
        %v1005 = vsel %vm974, %v996, 0.0
        %1006 = vadd.xlane.f32.xlu0 %v1005
        %v1007 = vpop.xlane.xlu0 %1006
        %v1008 = vsel %vm974, %v998, 0.0
        %1009 = vadd.xlane.f32.xlu0 %v1008
        %v1010 = vpop.xlane.xlu0 %1009
        %v1011 = vrcp.pop %v1001
        %v1012 = vrcp.pop %v1004
        %v1013 = vrcp.pop %v1007
        %v1014 = vrcp.pop %v1010
        %v1015 = vmul.f32 %v992, %v1011
        %v1016 = vmul.f32 %v994, %v1012
        %v1017 = vmul.f32 %v996, %v1013
        %v1018 = vmul.f32 %v998, %v1014
        %v1019 = vpack.c.bf16 %v1016, %v1015
        %v1020 = vpack.c.bf16 %v1018, %v1017
        %1021 = vrot.lane.b32.xlu0 %v871, 64
        %v1022 = vpop.permute.xlu0 %1021
        %v1025 = vsel %vm974, %v1019, 0
        %1027 = vmatprep.subr.bf16.mxu0 0
        %1028 = vmatpush1.bf16.msra.mxu0 %v1022
        %1029 = vmatprep.subr.bf16.mxu0 0
        %1030 = vmatpush1.bf16.msra.mxu0 0
        %1031 = vmatprep.subr.bf16.mxu0 0
        %1032 = vmatpush1.bf16.msra.mxu0 0
        %1033 = vmatprep.subr.bf16.mxu0 0
        %1034 = vmatpush1.bf16.msra.mxu0 0
        %1035 = vmatprep.subr.bf16.mxu0 0
        %1036 = vmatpush1.bf16.msra.mxu0 0
        %1037 = vmatprep.subr.bf16.mxu0 0
        %1038 = vmatpush1.bf16.msra.mxu0 0
        %1039 = vmatprep.subr.bf16.mxu0 0
        %1040 = vmatpush1.bf16.msra.mxu0 0
        %1041 = vmatprep.subr.bf16.mxu0 0
        %1042 = vmatpush1.bf16.msra.mxu0 0
        %1043 = vmatprep.subr.bf16.mxu0 0
        %1044 = vmatpush1.bf16.msra.mxu0 0
        %1045 = vmatprep.subr.bf16.mxu0 0
        %1046 = vmatpush1.bf16.msra.mxu0 0
        %1047 = vmatprep.subr.bf16.mxu0 0
        %1048 = vmatpush1.bf16.msra.mxu0 0
        %1049 = vmatprep.subr.bf16.mxu0 0
        %1050 = vmatpush1.bf16.msra.mxu0 0
        %1051 = vmatprep.subr.bf16.mxu0 0
        %1052 = vmatpush1.bf16.msra.mxu0 0
        %1053 = vmatprep.subr.bf16.mxu0 0
        %1054 = vmatpush1.bf16.msra.mxu0 0
        %1055 = vmatprep.subr.bf16.mxu0 0
        %1056 = vmatpush1.bf16.msra.mxu0 0
        %1057 = vmatprep.subr.bf16.mxu0 0
        %1058 = vmatpush1.bf16.msra.mxu0 0
        %1059 = vmatprep.mubr.bf16.mxu0 0
        %1060 = vmatmul.mubr.bf16.gmra.mrb[0].mxu0 %v1025
        %v1061 = vpop.f32.mrb[0].mxu0
        %v1062 = vadd.f32 0.0, %v1061
        %v1063 = vpop.f32.mrb[0].mxu0
        %v1064 = vpop.f32.mrb[0].mxu0
        %v1065 = vadd.f32 0.0, %v1064
        %v1066 = vpop.f32.mrb[0].mxu0
        %1067 = vdwg.mxu0
        %1068 = vrot.lane.b32.xlu0 %v872, 64
        %v1069 = vpop.permute.xlu0 %1068
        %v1072 = vsel %vm974, %v1020, 0
        %1074 = vmatprep.subr.bf16.mxu0 0
        %1075 = vmatpush1.bf16.msra.mxu0 %v1069
        %1076 = vmatprep.subr.bf16.mxu0 0
        %1077 = vmatpush1.bf16.msra.mxu0 0
        %1078 = vmatprep.subr.bf16.mxu0 0
        %1079 = vmatpush1.bf16.msra.mxu0 0
        %1080 = vmatprep.subr.bf16.mxu0 0
        %1081 = vmatpush1.bf16.msra.mxu0 0
        %1082 = vmatprep.subr.bf16.mxu0 0
        %1083 = vmatpush1.bf16.msra.mxu0 0
        %1084 = vmatprep.subr.bf16.mxu0 0
        %1085 = vmatpush1.bf16.msra.mxu0 0
        %1086 = vmatprep.subr.bf16.mxu0 0
        %1087 = vmatpush1.bf16.msra.mxu0 0
        %1088 = vmatprep.subr.bf16.mxu0 0
        %1089 = vmatpush1.bf16.msra.mxu0 0
        %1090 = vmatprep.subr.bf16.mxu0 0
        %1091 = vmatpush1.bf16.msra.mxu0 0
        %1092 = vmatprep.subr.bf16.mxu0 0
        %1093 = vmatpush1.bf16.msra.mxu0 0
        %1094 = vmatprep.subr.bf16.mxu0 0
        %1095 = vmatpush1.bf16.msra.mxu0 0
        %1096 = vmatprep.subr.bf16.mxu0 0
        %1097 = vmatpush1.bf16.msra.mxu0 0
        %1098 = vmatprep.subr.bf16.mxu0 0
        %1099 = vmatpush1.bf16.msra.mxu0 0
        %1100 = vmatprep.subr.bf16.mxu0 0
        %1101 = vmatpush1.bf16.msra.mxu0 0
        %1102 = vmatprep.subr.bf16.mxu0 0
        %1103 = vmatpush1.bf16.msra.mxu0 0
        %1104 = vmatprep.subr.bf16.mxu0 0
        %1105 = vmatpush1.bf16.msra.mxu0 0
        %1106 = vmatprep.mubr.bf16.mxu0 0
        %1107 = vmatmul.mubr.bf16.gmra.mrb[0].mxu0 %v1072
        %v1108 = vpop.f32.mrb[0].mxu0
        %v1109 = vadd.f32 0.0, %v1108
        %v1110 = vpop.f32.mrb[0].mxu0
        %v1111 = vpop.f32.mrb[0].mxu0
        %v1112 = vadd.f32 0.0, %v1111
        %v1113 = vpop.f32.mrb[0].mxu0
        %1114 = vdwg.mxu0
        %v1115 = vpack.c.bf16 %v1065, %v1062
        %v1116 = vpack.c.bf16 %v1112, %v1109
        %1117 = vst.msk [vmem:[#allocation3] sm:$0xff] %vm876, %v1115
        %1118 = vst.msk [vmem:[#allocation3 + $0x8] sm:$0xff] %vm876, %v1116
        %1119 = vrot.lane.b32.xlu0 %v871, 120
        %v1120 = vpop.permute.xlu0 %1119
        %1121 = vrot.lane.b32.xlu0 %v871, 88
        %v1122 = vpop.permute.xlu0 %1121
        %v1124 = vsel %vm876, %v1120, 0
        %v1127 = vsel %vm876, %v1122, 0
        %1129 = vmatprep.subr.bf16.mxu0 0
        %1130 = vmatpush1.bf16.xpose.msra.mxu0 %v1127
        %1131 = vmatprep.subr.bf16.mxu0 0
        %1132 = vmatpush1.bf16.xpose.msra.mxu0 0
        %1133 = vmatprep.subr.bf16.mxu0 0
        %1134 = vmatpush1.bf16.xpose.msra.mxu0 0
        %1135 = vmatprep.subr.bf16.mxu0 0
        %1136 = vmatpush1.bf16.xpose.msra.mxu0 0
        %1137 = vmatprep.subr.bf16.mxu0 0
        %1138 = vmatpush1.bf16.xpose.msra.mxu0 0
        %1139 = vmatprep.subr.bf16.mxu0 0
        %1140 = vmatpush1.bf16.xpose.msra.mxu0 0
        %1141 = vmatprep.subr.bf16.mxu0 0
        %1142 = vmatpush1.bf16.xpose.msra.mxu0 0
        %1143 = vmatprep.subr.bf16.mxu0 0
        %1144 = vmatpush1.bf16.xpose.msra.mxu0 0
        %1145 = vmatprep.subr.bf16.mxu0 0
        %1146 = vmatpush1.bf16.xpose.msra.mxu0 0
        %1147 = vmatprep.subr.bf16.mxu0 0
        %1148 = vmatpush1.bf16.xpose.msra.mxu0 0
        %1149 = vmatprep.subr.bf16.mxu0 0
        %1150 = vmatpush1.bf16.xpose.msra.mxu0 0
        %1151 = vmatprep.subr.bf16.mxu0 0
        %1152 = vmatpush1.bf16.xpose.msra.mxu0 0
        %1153 = vmatprep.subr.bf16.mxu0 0
        %1154 = vmatpush1.bf16.xpose.msra.mxu0 0
        %1155 = vmatprep.subr.bf16.mxu0 0
        %1156 = vmatpush1.bf16.xpose.msra.mxu0 0
        %1157 = vmatprep.subr.bf16.mxu0 0
        %1158 = vmatpush1.bf16.xpose.msra.mxu0 0
        %1159 = vmatprep.subr.bf16.mxu0 0
        %1160 = vmatpush1.bf16.xpose.msra.mxu0 0
        %1161 = vmatprep.mubr.bf16.mxu0 0
        %1162 = vmatmul.mubr.bf16.gmra.mrb[0].mxu0 %v1124
        %v1163 = vpop.f32.mrb[0].mxu0
        %v1164 = vadd.f32 0.0, %v1163
        %v1165 = vpop.f32.mrb[0].mxu0
        %v1166 = vpop.f32.mrb[0].mxu0
        %v1167 = vadd.f32 0.0, %v1166
        %v1168 = vpop.f32.mrb[0].mxu0
        %1169 = vdwg.mxu0
        %1170 = vrot.lane.b32.xlu0 %v872, 120
        %v1171 = vpop.permute.xlu0 %1170
        %1172 = vrot.lane.b32.xlu0 %v872, 88
        %v1173 = vpop.permute.xlu0 %1172
        %v1175 = vsel %vm876, %v1171, 0
        %v1178 = vsel %vm876, %v1173, 0
        %1180 = vmatprep.subr.bf16.mxu0 0
        %1181 = vmatpush1.bf16.xpose.msra.mxu0 %v1178
        %1182 = vmatprep.subr.bf16.mxu0 0
        %1183 = vmatpush1.bf16.xpose.msra.mxu0 0
        %1184 = vmatprep.subr.bf16.mxu0 0
        %1185 = vmatpush1.bf16.xpose.msra.mxu0 0
        %1186 = vmatprep.subr.bf16.mxu0 0
        %1187 = vmatpush1.bf16.xpose.msra.mxu0 0
        %1188 = vmatprep.subr.bf16.mxu0 0
        %1189 = vmatpush1.bf16.xpose.msra.mxu0 0
        %1190 = vmatprep.subr.bf16.mxu0 0
        %1191 = vmatpush1.bf16.xpose.msra.mxu0 0
        %1192 = vmatprep.subr.bf16.mxu0 0
        %1193 = vmatpush1.bf16.xpose.msra.mxu0 0
        %1194 = vmatprep.subr.bf16.mxu0 0
        %1195 = vmatpush1.bf16.xpose.msra.mxu0 0
        %1196 = vmatprep.subr.bf16.mxu0 0
        %1197 = vmatpush1.bf16.xpose.msra.mxu0 0
        %1198 = vmatprep.subr.bf16.mxu0 0
        %1199 = vmatpush1.bf16.xpose.msra.mxu0 0
        %1200 = vmatprep.subr.bf16.mxu0 0
        %1201 = vmatpush1.bf16.xpose.msra.mxu0 0
        %1202 = vmatprep.subr.bf16.mxu0 0
        %1203 = vmatpush1.bf16.xpose.msra.mxu0 0
        %1204 = vmatprep.subr.bf16.mxu0 0
        %1205 = vmatpush1.bf16.xpose.msra.mxu0 0
        %1206 = vmatprep.subr.bf16.mxu0 0
        %1207 = vmatpush1.bf16.xpose.msra.mxu0 0
        %1208 = vmatprep.subr.bf16.mxu0 0
        %1209 = vmatpush1.bf16.xpose.msra.mxu0 0
        %1210 = vmatprep.subr.bf16.mxu0 0
        %1211 = vmatpush1.bf16.xpose.msra.mxu0 0
        %1212 = vmatprep.mubr.bf16.mxu0 0
        %1213 = vmatmul.mubr.bf16.gmra.mrb[0].mxu0 %v1175
        %v1214 = vpop.f32.mrb[0].mxu0
        %v1215 = vadd.f32 0.0, %v1214
        %v1216 = vpop.f32.mrb[0].mxu0
        %v1217 = vpop.f32.mrb[0].mxu0
        %v1218 = vadd.f32 0.0, %v1217
        %v1219 = vpop.f32.mrb[0].mxu0
        %1220 = vdwg.mxu0
        %v1221 = vsel %vm974, %v1164, -inf
        %1222 = vmax.xlane.f32.xlu0 %v1221
        %v1223 = vpop.xlane.xlu0 %1222
        %v1224 = vsel %vm974, %v1167, -inf
        %1225 = vmax.xlane.f32.xlu0 %v1224
        %v1226 = vpop.xlane.xlu0 %1225
        %v1227 = vsel %vm974, %v1215, -inf
        %1228 = vmax.xlane.f32.xlu0 %v1227
        %v1229 = vpop.xlane.xlu0 %1228
        %v1230 = vsel %vm974, %v1218, -inf
        %1231 = vmax.xlane.f32.xlu0 %v1230
        %v1232 = vpop.xlane.xlu0 %1231
        %v1233 = vsub.f32 %v1164, %v1223
        %v1234 = vsub.f32 %v1167, %v1226
        %v1235 = vsub.f32 %v1215, %v1229
        %v1236 = vsub.f32 %v1218, %v1232
        %v1237 = vmul.f32 %v1233, 1.442695
        %v1238 = vpow.pop %v1237
        %v1239 = vmul.f32 %v1234, 1.442695
        %v1240 = vpow.pop %v1239
        %v1241 = vmul.f32 %v1235, 1.442695
        %v1242 = vpow.pop %v1241
        %v1243 = vmul.f32 %v1236, 1.442695
        %v1244 = vpow.pop %v1243
        %v1245 = vsel %vm974, %v1238, 0.0
        %1246 = vadd.xlane.f32.xlu0 %v1245
        %v1247 = vpop.xlane.xlu0 %1246
        %v1248 = vsel %vm974, %v1240, 0.0
        %1249 = vadd.xlane.f32.xlu0 %v1248
        %v1250 = vpop.xlane.xlu0 %1249
        %v1251 = vsel %vm974, %v1242, 0.0
        %1252 = vadd.xlane.f32.xlu0 %v1251
        %v1253 = vpop.xlane.xlu0 %1252
        %v1254 = vsel %vm974, %v1244, 0.0
        %1255 = vadd.xlane.f32.xlu0 %v1254
        %v1256 = vpop.xlane.xlu0 %1255
        %v1257 = vrcp.pop %v1247
        %v1258 = vrcp.pop %v1250
        %v1259 = vrcp.pop %v1253
        %v1260 = vrcp.pop %v1256
        %v1261 = vmul.f32 %v1238, %v1257
        %v1262 = vmul.f32 %v1240, %v1258
        %v1263 = vmul.f32 %v1242, %v1259
        %v1264 = vmul.f32 %v1244, %v1260
        %v1265 = vpack.c.bf16 %v1262, %v1261
        %v1266 = vpack.c.bf16 %v1264, %v1263
        %1267 = vrot.lane.b32.xlu0 %v871, 56
        %v1268 = vpop.permute.xlu0 %1267
        %v1271 = vsel %vm974, %v1265, 0
        %1273 = vmatprep.subr.bf16.mxu0 0
        %1274 = vmatpush1.bf16.msra.mxu0 %v1268
        %1275 = vmatprep.subr.bf16.mxu0 0
        %1276 = vmatpush1.bf16.msra.mxu0 0
        %1277 = vmatprep.subr.bf16.mxu0 0
        %1278 = vmatpush1.bf16.msra.mxu0 0
        %1279 = vmatprep.subr.bf16.mxu0 0
        %1280 = vmatpush1.bf16.msra.mxu0 0
        %1281 = vmatprep.subr.bf16.mxu0 0
        %1282 = vmatpush1.bf16.msra.mxu0 0
        %1283 = vmatprep.subr.bf16.mxu0 0
        %1284 = vmatpush1.bf16.msra.mxu0 0
        %1285 = vmatprep.subr.bf16.mxu0 0
        %1286 = vmatpush1.bf16.msra.mxu0 0
        %1287 = vmatprep.subr.bf16.mxu0 0
        %1288 = vmatpush1.bf16.msra.mxu0 0
        %1289 = vmatprep.subr.bf16.mxu0 0
        %1290 = vmatpush1.bf16.msra.mxu0 0
        %1291 = vmatprep.subr.bf16.mxu0 0
        %1292 = vmatpush1.bf16.msra.mxu0 0
        %1293 = vmatprep.subr.bf16.mxu0 0
        %1294 = vmatpush1.bf16.msra.mxu0 0
        %1295 = vmatprep.subr.bf16.mxu0 0
        %1296 = vmatpush1.bf16.msra.mxu0 0
        %1297 = vmatprep.subr.bf16.mxu0 0
        %1298 = vmatpush1.bf16.msra.mxu0 0
        %1299 = vmatprep.subr.bf16.mxu0 0
        %1300 = vmatpush1.bf16.msra.mxu0 0
        %1301 = vmatprep.subr.bf16.mxu0 0
        %1302 = vmatpush1.bf16.msra.mxu0 0
        %1303 = vmatprep.subr.bf16.mxu0 0
        %1304 = vmatpush1.bf16.msra.mxu0 0
        %1305 = vmatprep.mubr.bf16.mxu0 0
        %1306 = vmatmul.mubr.bf16.gmra.mrb[0].mxu0 %v1271
        %v1307 = vpop.f32.mrb[0].mxu0
        %v1308 = vadd.f32 0.0, %v1307
        %v1309 = vpop.f32.mrb[0].mxu0
        %v1310 = vpop.f32.mrb[0].mxu0
        %v1311 = vadd.f32 0.0, %v1310
        %v1312 = vpop.f32.mrb[0].mxu0
        %1313 = vdwg.mxu0
        %1314 = vrot.lane.b32.xlu0 %v872, 56
        %v1315 = vpop.permute.xlu0 %1314
        %v1318 = vsel %vm974, %v1266, 0
        %1320 = vmatprep.subr.bf16.mxu0 0
        %1321 = vmatpush1.bf16.msra.mxu0 %v1315
        %1322 = vmatprep.subr.bf16.mxu0 0
        %1323 = vmatpush1.bf16.msra.mxu0 0
        %1324 = vmatprep.subr.bf16.mxu0 0
        %1325 = vmatpush1.bf16.msra.mxu0 0
        %1326 = vmatprep.subr.bf16.mxu0 0
        %1327 = vmatpush1.bf16.msra.mxu0 0
        %1328 = vmatprep.subr.bf16.mxu0 0
        %1329 = vmatpush1.bf16.msra.mxu0 0
        %1330 = vmatprep.subr.bf16.mxu0 0
        %1331 = vmatpush1.bf16.msra.mxu0 0
        %1332 = vmatprep.subr.bf16.mxu0 0
        %1333 = vmatpush1.bf16.msra.mxu0 0
        %1334 = vmatprep.subr.bf16.mxu0 0
        %1335 = vmatpush1.bf16.msra.mxu0 0
        %1336 = vmatprep.subr.bf16.mxu0 0
        %1337 = vmatpush1.bf16.msra.mxu0 0
        %1338 = vmatprep.subr.bf16.mxu0 0
        %1339 = vmatpush1.bf16.msra.mxu0 0
        %1340 = vmatprep.subr.bf16.mxu0 0
        %1341 = vmatpush1.bf16.msra.mxu0 0
        %1342 = vmatprep.subr.bf16.mxu0 0
        %1343 = vmatpush1.bf16.msra.mxu0 0
        %1344 = vmatprep.subr.bf16.mxu0 0
        %1345 = vmatpush1.bf16.msra.mxu0 0
        %1346 = vmatprep.subr.bf16.mxu0 0
        %1347 = vmatpush1.bf16.msra.mxu0 0
        %1348 = vmatprep.subr.bf16.mxu0 0
        %1349 = vmatpush1.bf16.msra.mxu0 0
        %1350 = vmatprep.subr.bf16.mxu0 0
        %1351 = vmatpush1.bf16.msra.mxu0 0
        %1352 = vmatprep.mubr.bf16.mxu0 0
        %1353 = vmatmul.mubr.bf16.gmra.mrb[0].mxu0 %v1318
        %v1354 = vpop.f32.mrb[0].mxu0
        %v1355 = vadd.f32 0.0, %v1354
        %v1356 = vpop.f32.mrb[0].mxu0
        %v1357 = vpop.f32.mrb[0].mxu0
        %v1358 = vadd.f32 0.0, %v1357
        %v1359 = vpop.f32.mrb[0].mxu0
        %1360 = vdwg.mxu0
        %v1361 = vpack.c.bf16 %v1311, %v1308
        %v1362 = vpack.c.bf16 %v1358, %v1355
        %1365 = vrot.lane.b32.xlu0 %v1361, 8
        %v1366 = vpop.permute.xlu0 %1365
        %1367 = vrot.lane.b32.xlu0 %v1362, 8
        %v1368 = vpop.permute.xlu0 %1367
        %vm1371 = vcmask 130112
        %1372 = vst.msk [vmem:[#allocation3] sm:$0xff] %vm1371, %v1366
        %1373 = vst.msk [vmem:[#allocation3 + $0x8] sm:$0xff] %vm1371, %v1368
        %1374 = vrot.lane.b32.xlu0 %v871, 112
        %v1375 = vpop.permute.xlu0 %1374
        %1376 = vrot.lane.b32.xlu0 %v871, 80
        %v1377 = vpop.permute.xlu0 %1376
        %v1379 = vsel %vm876, %v1375, 0
        %v1382 = vsel %vm876, %v1377, 0
        %1384 = vmatprep.subr.bf16.mxu0 0
        %1385 = vmatpush1.bf16.xpose.msra.mxu0 %v1382
        %1386 = vmatprep.subr.bf16.mxu0 0
        %1387 = vmatpush1.bf16.xpose.msra.mxu0 0
        %1388 = vmatprep.subr.bf16.mxu0 0
        %1389 = vmatpush1.bf16.xpose.msra.mxu0 0
        %1390 = vmatprep.subr.bf16.mxu0 0
        %1391 = vmatpush1.bf16.xpose.msra.mxu0 0
        %1392 = vmatprep.subr.bf16.mxu0 0
        %1393 = vmatpush1.bf16.xpose.msra.mxu0 0
        %1394 = vmatprep.subr.bf16.mxu0 0
        %1395 = vmatpush1.bf16.xpose.msra.mxu0 0
        %1396 = vmatprep.subr.bf16.mxu0 0
        %1397 = vmatpush1.bf16.xpose.msra.mxu0 0
        %1398 = vmatprep.subr.bf16.mxu0 0
        %1399 = vmatpush1.bf16.xpose.msra.mxu0 0
        %1400 = vmatprep.subr.bf16.mxu0 0
        %1401 = vmatpush1.bf16.xpose.msra.mxu0 0
        %1402 = vmatprep.subr.bf16.mxu0 0
        %1403 = vmatpush1.bf16.xpose.msra.mxu0 0
        %1404 = vmatprep.subr.bf16.mxu0 0
        %1405 = vmatpush1.bf16.xpose.msra.mxu0 0
        %1406 = vmatprep.subr.bf16.mxu0 0
        %1407 = vmatpush1.bf16.xpose.msra.mxu0 0
        %1408 = vmatprep.subr.bf16.mxu0 0
        %1409 = vmatpush1.bf16.xpose.msra.mxu0 0
        %1410 = vmatprep.subr.bf16.mxu0 0
        %1411 = vmatpush1.bf16.xpose.msra.mxu0 0
        %1412 = vmatprep.subr.bf16.mxu0 0
        %1413 = vmatpush1.bf16.xpose.msra.mxu0 0
        %1414 = vmatprep.subr.bf16.mxu0 0
        %1415 = vmatpush1.bf16.xpose.msra.mxu0 0
        %1416 = vmatprep.mubr.bf16.mxu0 0
        %1417 = vmatmul.mubr.bf16.gmra.mrb[0].mxu0 %v1379
        %v1418 = vpop.f32.mrb[0].mxu0
        %v1419 = vadd.f32 0.0, %v1418
        %v1420 = vpop.f32.mrb[0].mxu0
        %v1421 = vpop.f32.mrb[0].mxu0
        %v1422 = vadd.f32 0.0, %v1421
        %v1423 = vpop.f32.mrb[0].mxu0
        %1424 = vdwg.mxu0
        %1425 = vrot.lane.b32.xlu0 %v872, 112
        %v1426 = vpop.permute.xlu0 %1425
        %1427 = vrot.lane.b32.xlu0 %v872, 80
        %v1428 = vpop.permute.xlu0 %1427
        %v1430 = vsel %vm876, %v1426, 0
        %v1433 = vsel %vm876, %v1428, 0
        %1435 = vmatprep.subr.bf16.mxu0 0
        %1436 = vmatpush1.bf16.xpose.msra.mxu0 %v1433
        %1437 = vmatprep.subr.bf16.mxu0 0
        %1438 = vmatpush1.bf16.xpose.msra.mxu0 0
        %1439 = vmatprep.subr.bf16.mxu0 0
        %1440 = vmatpush1.bf16.xpose.msra.mxu0 0
        %1441 = vmatprep.subr.bf16.mxu0 0
        %1442 = vmatpush1.bf16.xpose.msra.mxu0 0
        %1443 = vmatprep.subr.bf16.mxu0 0
        %1444 = vmatpush1.bf16.xpose.msra.mxu0 0
        %1445 = vmatprep.subr.bf16.mxu0 0
        %1446 = vmatpush1.bf16.xpose.msra.mxu0 0
        %1447 = vmatprep.subr.bf16.mxu0 0
        %1448 = vmatpush1.bf16.xpose.msra.mxu0 0
        %1449 = vmatprep.subr.bf16.mxu0 0
        %1450 = vmatpush1.bf16.xpose.msra.mxu0 0
        %1451 = vmatprep.subr.bf16.mxu0 0
        %1452 = vmatpush1.bf16.xpose.msra.mxu0 0
        %1453 = vmatprep.subr.bf16.mxu0 0
        %1454 = vmatpush1.bf16.xpose.msra.mxu0 0
        %1455 = vmatprep.subr.bf16.mxu0 0
        %1456 = vmatpush1.bf16.xpose.msra.mxu0 0
        %1457 = vmatprep.subr.bf16.mxu0 0
        %1458 = vmatpush1.bf16.xpose.msra.mxu0 0
        %1459 = vmatprep.subr.bf16.mxu0 0
        %1460 = vmatpush1.bf16.xpose.msra.mxu0 0
        %1461 = vmatprep.subr.bf16.mxu0 0
        %1462 = vmatpush1.bf16.xpose.msra.mxu0 0
        %1463 = vmatprep.subr.bf16.mxu0 0
        %1464 = vmatpush1.bf16.xpose.msra.mxu0 0
        %1465 = vmatprep.subr.bf16.mxu0 0
        %1466 = vmatpush1.bf16.xpose.msra.mxu0 0
        %1467 = vmatprep.mubr.bf16.mxu0 0
        %1468 = vmatmul.mubr.bf16.gmra.mrb[0].mxu0 %v1430
        %v1469 = vpop.f32.mrb[0].mxu0
        %v1470 = vadd.f32 0.0, %v1469
        %v1471 = vpop.f32.mrb[0].mxu0
        %v1472 = vpop.f32.mrb[0].mxu0
        %v1473 = vadd.f32 0.0, %v1472
        %v1474 = vpop.f32.mrb[0].mxu0
        %1475 = vdwg.mxu0
        %v1476 = vsel %vm974, %v1419, -inf
        %1477 = vmax.xlane.f32.xlu0 %v1476
        %v1478 = vpop.xlane.xlu0 %1477
        %v1479 = vsel %vm974, %v1422, -inf
        %1480 = vmax.xlane.f32.xlu0 %v1479
        %v1481 = vpop.xlane.xlu0 %1480
        %v1482 = vsel %vm974, %v1470, -inf
        %1483 = vmax.xlane.f32.xlu0 %v1482
        %v1484 = vpop.xlane.xlu0 %1483
        %v1485 = vsel %vm974, %v1473, -inf
        %1486 = vmax.xlane.f32.xlu0 %v1485
        %v1487 = vpop.xlane.xlu0 %1486
        %v1488 = vsub.f32 %v1419, %v1478
        %v1489 = vsub.f32 %v1422, %v1481
        %v1490 = vsub.f32 %v1470, %v1484
        %v1491 = vsub.f32 %v1473, %v1487
        %v1492 = vmul.f32 %v1488, 1.442695
        %v1493 = vpow.pop %v1492
        %v1494 = vmul.f32 %v1489, 1.442695
        %v1495 = vpow.pop %v1494
        %v1496 = vmul.f32 %v1490, 1.442695
        %v1497 = vpow.pop %v1496
        %v1498 = vmul.f32 %v1491, 1.442695
        %v1499 = vpow.pop %v1498
        %v1500 = vsel %vm974, %v1493, 0.0
        %1501 = vadd.xlane.f32.xlu0 %v1500
        %v1502 = vpop.xlane.xlu0 %1501
        %v1503 = vsel %vm974, %v1495, 0.0
        %1504 = vadd.xlane.f32.xlu0 %v1503
        %v1505 = vpop.xlane.xlu0 %1504
        %v1506 = vsel %vm974, %v1497, 0.0
        %1507 = vadd.xlane.f32.xlu0 %v1506
        %v1508 = vpop.xlane.xlu0 %1507
        %v1509 = vsel %vm974, %v1499, 0.0
        %1510 = vadd.xlane.f32.xlu0 %v1509
        %v1511 = vpop.xlane.xlu0 %1510
        %v1512 = vrcp.pop %v1502
        %v1513 = vrcp.pop %v1505
        %v1514 = vrcp.pop %v1508
        %v1515 = vrcp.pop %v1511
        %v1516 = vmul.f32 %v1493, %v1512
        %v1517 = vmul.f32 %v1495, %v1513
        %v1518 = vmul.f32 %v1497, %v1514
        %v1519 = vmul.f32 %v1499, %v1515
        %v1520 = vpack.c.bf16 %v1517, %v1516
        %v1521 = vpack.c.bf16 %v1519, %v1518
        %1522 = vrot.lane.b32.xlu0 %v871, 48
        %v1523 = vpop.permute.xlu0 %1522
        %v1526 = vsel %vm974, %v1520, 0
        %1528 = vmatprep.subr.bf16.mxu0 0
        %1529 = vmatpush1.bf16.msra.mxu0 %v1523
        %1530 = vmatprep.subr.bf16.mxu0 0
        %1531 = vmatpush1.bf16.msra.mxu0 0
        %1532 = vmatprep.subr.bf16.mxu0 0
        %1533 = vmatpush1.bf16.msra.mxu0 0
        %1534 = vmatprep.subr.bf16.mxu0 0
        %1535 = vmatpush1.bf16.msra.mxu0 0
        %1536 = vmatprep.subr.bf16.mxu0 0
        %1537 = vmatpush1.bf16.msra.mxu0 0
        %1538 = vmatprep.subr.bf16.mxu0 0
        %1539 = vmatpush1.bf16.msra.mxu0 0
        %1540 = vmatprep.subr.bf16.mxu0 0
        %1541 = vmatpush1.bf16.msra.mxu0 0
        %1542 = vmatprep.subr.bf16.mxu0 0
        %1543 = vmatpush1.bf16.msra.mxu0 0
        %1544 = vmatprep.subr.bf16.mxu0 0
        %1545 = vmatpush1.bf16.msra.mxu0 0
        %1546 = vmatprep.subr.bf16.mxu0 0
        %1547 = vmatpush1.bf16.msra.mxu0 0
        %1548 = vmatprep.subr.bf16.mxu0 0
        %1549 = vmatpush1.bf16.msra.mxu0 0
        %1550 = vmatprep.subr.bf16.mxu0 0
        %1551 = vmatpush1.bf16.msra.mxu0 0
        %1552 = vmatprep.subr.bf16.mxu0 0
        %1553 = vmatpush1.bf16.msra.mxu0 0
        %1554 = vmatprep.subr.bf16.mxu0 0
        %1555 = vmatpush1.bf16.msra.mxu0 0
        %1556 = vmatprep.subr.bf16.mxu0 0
        %1557 = vmatpush1.bf16.msra.mxu0 0
        %1558 = vmatprep.subr.bf16.mxu0 0
        %1559 = vmatpush1.bf16.msra.mxu0 0
        %1560 = vmatprep.mubr.bf16.mxu0 0
        %1561 = vmatmul.mubr.bf16.gmra.mrb[0].mxu0 %v1526
        %v1562 = vpop.f32.mrb[0].mxu0
        %v1563 = vadd.f32 0.0, %v1562
        %v1564 = vpop.f32.mrb[0].mxu0
        %v1565 = vpop.f32.mrb[0].mxu0
        %v1566 = vadd.f32 0.0, %v1565
        %v1567 = vpop.f32.mrb[0].mxu0
        %1568 = vdwg.mxu0
        %1569 = vrot.lane.b32.xlu0 %v872, 48
        %v1570 = vpop.permute.xlu0 %1569
        %v1573 = vsel %vm974, %v1521, 0
        %1575 = vmatprep.subr.bf16.mxu0 0
        %1576 = vmatpush1.bf16.msra.mxu0 %v1570
        %1577 = vmatprep.subr.bf16.mxu0 0
        %1578 = vmatpush1.bf16.msra.mxu0 0
        %1579 = vmatprep.subr.bf16.mxu0 0
        %1580 = vmatpush1.bf16.msra.mxu0 0
        %1581 = vmatprep.subr.bf16.mxu0 0
        %1582 = vmatpush1.bf16.msra.mxu0 0
        %1583 = vmatprep.subr.bf16.mxu0 0
        %1584 = vmatpush1.bf16.msra.mxu0 0
        %1585 = vmatprep.subr.bf16.mxu0 0
        %1586 = vmatpush1.bf16.msra.mxu0 0
        %1587 = vmatprep.subr.bf16.mxu0 0
        %1588 = vmatpush1.bf16.msra.mxu0 0
        %1589 = vmatprep.subr.bf16.mxu0 0
        %1590 = vmatpush1.bf16.msra.mxu0 0
        %1591 = vmatprep.subr.bf16.mxu0 0
        %1592 = vmatpush1.bf16.msra.mxu0 0
        %1593 = vmatprep.subr.bf16.mxu0 0
        %1594 = vmatpush1.bf16.msra.mxu0 0
        %1595 = vmatprep.subr.bf16.mxu0 0
        %1596 = vmatpush1.bf16.msra.mxu0 0
        %1597 = vmatprep.subr.bf16.mxu0 0
        %1598 = vmatpush1.bf16.msra.mxu0 0
        %1599 = vmatprep.subr.bf16.mxu0 0
        %1600 = vmatpush1.bf16.msra.mxu0 0
        %1601 = vmatprep.subr.bf16.mxu0 0
        %1602 = vmatpush1.bf16.msra.mxu0 0
        %1603 = vmatprep.subr.bf16.mxu0 0
        %1604 = vmatpush1.bf16.msra.mxu0 0
        %1605 = vmatprep.subr.bf16.mxu0 0
        %1606 = vmatpush1.bf16.msra.mxu0 0
        %1607 = vmatprep.mubr.bf16.mxu0 0
        %1608 = vmatmul.mubr.bf16.gmra.mrb[0].mxu0 %v1573
        %v1609 = vpop.f32.mrb[0].mxu0
        %v1610 = vadd.f32 0.0, %v1609
        %v1611 = vpop.f32.mrb[0].mxu0
        %v1612 = vpop.f32.mrb[0].mxu0
        %v1613 = vadd.f32 0.0, %v1612
        %v1614 = vpop.f32.mrb[0].mxu0
        %1615 = vdwg.mxu0
        %v1616 = vpack.c.bf16 %v1566, %v1563
        %v1617 = vpack.c.bf16 %v1613, %v1610
        %1620 = vrot.lane.b32.xlu0 %v1616, 16
        %v1621 = vpop.permute.xlu0 %1620
        %1622 = vrot.lane.b32.xlu0 %v1617, 16
        %v1623 = vpop.permute.xlu0 %1622
        %vm1626 = vcmask 195712
        %1627 = vst.msk [vmem:[#allocation3] sm:$0xff] %vm1626, %v1621
        %1628 = vst.msk [vmem:[#allocation3 + $0x8] sm:$0xff] %vm1626, %v1623
        %1629 = vrot.lane.b32.xlu0 %v871, 104
        %v1630 = vpop.permute.xlu0 %1629
        %1631 = vrot.lane.b32.xlu0 %v871, 72
        %v1632 = vpop.permute.xlu0 %1631
        %v1634 = vsel %vm876, %v1630, 0
        %v1637 = vsel %vm876, %v1632, 0
        %1639 = vmatprep.subr.bf16.mxu0 0
        %1640 = vmatpush1.bf16.xpose.msra.mxu0 %v1637
        %1641 = vmatprep.subr.bf16.mxu0 0
        %1642 = vmatpush1.bf16.xpose.msra.mxu0 0
        %1643 = vmatprep.subr.bf16.mxu0 0
        %1644 = vmatpush1.bf16.xpose.msra.mxu0 0
        %1645 = vmatprep.subr.bf16.mxu0 0
        %1646 = vmatpush1.bf16.xpose.msra.mxu0 0
        %1647 = vmatprep.subr.bf16.mxu0 0
        %1648 = vmatpush1.bf16.xpose.msra.mxu0 0
        %1649 = vmatprep.subr.bf16.mxu0 0
        %1650 = vmatpush1.bf16.xpose.msra.mxu0 0
        %1651 = vmatprep.subr.bf16.mxu0 0
        %1652 = vmatpush1.bf16.xpose.msra.mxu0 0
        %1653 = vmatprep.subr.bf16.mxu0 0
        %1654 = vmatpush1.bf16.xpose.msra.mxu0 0
        %1655 = vmatprep.subr.bf16.mxu0 0
        %1656 = vmatpush1.bf16.xpose.msra.mxu0 0
        %1657 = vmatprep.subr.bf16.mxu0 0
        %1658 = vmatpush1.bf16.xpose.msra.mxu0 0
        %1659 = vmatprep.subr.bf16.mxu0 0
        %1660 = vmatpush1.bf16.xpose.msra.mxu0 0
        %1661 = vmatprep.subr.bf16.mxu0 0
        %1662 = vmatpush1.bf16.xpose.msra.mxu0 0
        %1663 = vmatprep.subr.bf16.mxu0 0
        %1664 = vmatpush1.bf16.xpose.msra.mxu0 0
        %1665 = vmatprep.subr.bf16.mxu0 0
        %1666 = vmatpush1.bf16.xpose.msra.mxu0 0
        %1667 = vmatprep.subr.bf16.mxu0 0
        %1668 = vmatpush1.bf16.xpose.msra.mxu0 0
        %1669 = vmatprep.subr.bf16.mxu0 0
        %1670 = vmatpush1.bf16.xpose.msra.mxu0 0
        %1671 = vmatprep.mubr.bf16.mxu0 0
        %1672 = vmatmul.mubr.bf16.gmra.mrb[0].mxu0 %v1634
        %v1673 = vpop.f32.mrb[0].mxu0
        %v1674 = vadd.f32 0.0, %v1673
        %v1675 = vpop.f32.mrb[0].mxu0
        %v1676 = vpop.f32.mrb[0].mxu0
        %v1677 = vadd.f32 0.0, %v1676
        %v1678 = vpop.f32.mrb[0].mxu0
        %1679 = vdwg.mxu0
        %1680 = vrot.lane.b32.xlu0 %v872, 104
        %v1681 = vpop.permute.xlu0 %1680
        %1682 = vrot.lane.b32.xlu0 %v872, 72
        %v1683 = vpop.permute.xlu0 %1682
        %v1685 = vsel %vm876, %v1681, 0
        %v1688 = vsel %vm876, %v1683, 0
        %1690 = vmatprep.subr.bf16.mxu0 0
        %1691 = vmatpush1.bf16.xpose.msra.mxu0 %v1688
        %1692 = vmatprep.subr.bf16.mxu0 0
        %1693 = vmatpush1.bf16.xpose.msra.mxu0 0
        %1694 = vmatprep.subr.bf16.mxu0 0
        %1695 = vmatpush1.bf16.xpose.msra.mxu0 0
        %1696 = vmatprep.subr.bf16.mxu0 0
        %1697 = vmatpush1.bf16.xpose.msra.mxu0 0
        %1698 = vmatprep.subr.bf16.mxu0 0
        %1699 = vmatpush1.bf16.xpose.msra.mxu0 0
        %1700 = vmatprep.subr.bf16.mxu0 0
        %1701 = vmatpush1.bf16.xpose.msra.mxu0 0
        %1702 = vmatprep.subr.bf16.mxu0 0
        %1703 = vmatpush1.bf16.xpose.msra.mxu0 0
        %1704 = vmatprep.subr.bf16.mxu0 0
        %1705 = vmatpush1.bf16.xpose.msra.mxu0 0
        %1706 = vmatprep.subr.bf16.mxu0 0
        %1707 = vmatpush1.bf16.xpose.msra.mxu0 0
        %1708 = vmatprep.subr.bf16.mxu0 0
        %1709 = vmatpush1.bf16.xpose.msra.mxu0 0
        %1710 = vmatprep.subr.bf16.mxu0 0
        %1711 = vmatpush1.bf16.xpose.msra.mxu0 0
        %1712 = vmatprep.subr.bf16.mxu0 0
        %1713 = vmatpush1.bf16.xpose.msra.mxu0 0
        %1714 = vmatprep.subr.bf16.mxu0 0
        %1715 = vmatpush1.bf16.xpose.msra.mxu0 0
        %1716 = vmatprep.subr.bf16.mxu0 0
        %1717 = vmatpush1.bf16.xpose.msra.mxu0 0
        %1718 = vmatprep.subr.bf16.mxu0 0
        %1719 = vmatpush1.bf16.xpose.msra.mxu0 0
        %1720 = vmatprep.subr.bf16.mxu0 0
        %1721 = vmatpush1.bf16.xpose.msra.mxu0 0
        %1722 = vmatprep.mubr.bf16.mxu0 0
        %1723 = vmatmul.mubr.bf16.gmra.mrb[0].mxu0 %v1685
        %v1724 = vpop.f32.mrb[0].mxu0
        %v1725 = vadd.f32 0.0, %v1724
        %v1726 = vpop.f32.mrb[0].mxu0
        %v1727 = vpop.f32.mrb[0].mxu0
        %v1728 = vadd.f32 0.0, %v1727
        %v1729 = vpop.f32.mrb[0].mxu0
        %1730 = vdwg.mxu0
        %v1731 = vsel %vm974, %v1674, -inf
        %1732 = vmax.xlane.f32.xlu0 %v1731
        %v1733 = vpop.xlane.xlu0 %1732
        %v1734 = vsel %vm974, %v1677, -inf
        %1735 = vmax.xlane.f32.xlu0 %v1734
        %v1736 = vpop.xlane.xlu0 %1735
        %v1737 = vsel %vm974, %v1725, -inf
        %1738 = vmax.xlane.f32.xlu0 %v1737
        %v1739 = vpop.xlane.xlu0 %1738
        %v1740 = vsel %vm974, %v1728, -inf
        %1741 = vmax.xlane.f32.xlu0 %v1740
        %v1742 = vpop.xlane.xlu0 %1741
        %v1743 = vsub.f32 %v1674, %v1733
        %v1744 = vsub.f32 %v1677, %v1736
        %v1745 = vsub.f32 %v1725, %v1739
        %v1746 = vsub.f32 %v1728, %v1742
        %v1747 = vmul.f32 %v1743, 1.442695
        %v1748 = vpow.pop %v1747
        %v1749 = vmul.f32 %v1744, 1.442695
        %v1750 = vpow.pop %v1749
        %v1751 = vmul.f32 %v1745, 1.442695
        %v1752 = vpow.pop %v1751
        %v1753 = vmul.f32 %v1746, 1.442695
        %v1754 = vpow.pop %v1753
        %v1755 = vsel %vm974, %v1748, 0.0
        %1756 = vadd.xlane.f32.xlu0 %v1755
        %v1757 = vpop.xlane.xlu0 %1756
        %v1758 = vsel %vm974, %v1750, 0.0
        %1759 = vadd.xlane.f32.xlu0 %v1758
        %v1760 = vpop.xlane.xlu0 %1759
        %v1761 = vsel %vm974, %v1752, 0.0
        %1762 = vadd.xlane.f32.xlu0 %v1761
        %v1763 = vpop.xlane.xlu0 %1762
        %v1764 = vsel %vm974, %v1754, 0.0
        %1765 = vadd.xlane.f32.xlu0 %v1764
        %v1766 = vpop.xlane.xlu0 %1765
        %v1767 = vrcp.pop %v1757
        %v1768 = vrcp.pop %v1760
        %v1769 = vrcp.pop %v1763
        %v1770 = vrcp.pop %v1766
        %v1771 = vmul.f32 %v1748, %v1767
        %v1772 = vmul.f32 %v1750, %v1768
        %v1773 = vmul.f32 %v1752, %v1769
        %v1774 = vmul.f32 %v1754, %v1770
        %v1775 = vpack.c.bf16 %v1772, %v1771
        %v1776 = vpack.c.bf16 %v1774, %v1773
        %1777 = vrot.lane.b32.xlu0 %v871, 40
        %v1778 = vpop.permute.xlu0 %1777
        %v1781 = vsel %vm974, %v1775, 0
        %1783 = vmatprep.subr.bf16.mxu0 0
        %1784 = vmatpush1.bf16.msra.mxu0 %v1778
        %1785 = vmatprep.subr.bf16.mxu0 0
        %1786 = vmatpush1.bf16.msra.mxu0 0
        %1787 = vmatprep.subr.bf16.mxu0 0
        %1788 = vmatpush1.bf16.msra.mxu0 0
        %1789 = vmatprep.subr.bf16.mxu0 0
        %1790 = vmatpush1.bf16.msra.mxu0 0
        %1791 = vmatprep.subr.bf16.mxu0 0
        %1792 = vmatpush1.bf16.msra.mxu0 0
        %1793 = vmatprep.subr.bf16.mxu0 0
        %1794 = vmatpush1.bf16.msra.mxu0 0
        %1795 = vmatprep.subr.bf16.mxu0 0
        %1796 = vmatpush1.bf16.msra.mxu0 0
        %1797 = vmatprep.subr.bf16.mxu0 0
        %1798 = vmatpush1.bf16.msra.mxu0 0
        %1799 = vmatprep.subr.bf16.mxu0 0
        %1800 = vmatpush1.bf16.msra.mxu0 0
        %1801 = vmatprep.subr.bf16.mxu0 0
        %1802 = vmatpush1.bf16.msra.mxu0 0
        %1803 = vmatprep.subr.bf16.mxu0 0
        %1804 = vmatpush1.bf16.msra.mxu0 0
        %1805 = vmatprep.subr.bf16.mxu0 0
        %1806 = vmatpush1.bf16.msra.mxu0 0
        %1807 = vmatprep.subr.bf16.mxu0 0
        %1808 = vmatpush1.bf16.msra.mxu0 0
        %1809 = vmatprep.subr.bf16.mxu0 0
        %1810 = vmatpush1.bf16.msra.mxu0 0
        %1811 = vmatprep.subr.bf16.mxu0 0
        %1812 = vmatpush1.bf16.msra.mxu0 0
        %1813 = vmatprep.subr.bf16.mxu0 0
        %1814 = vmatpush1.bf16.msra.mxu0 0
        %1815 = vmatprep.mubr.bf16.mxu0 0
        %1816 = vmatmul.mubr.bf16.gmra.mrb[0].mxu0 %v1781
        %v1817 = vpop.f32.mrb[0].mxu0
        %v1818 = vadd.f32 0.0, %v1817
        %v1819 = vpop.f32.mrb[0].mxu0
        %v1820 = vpop.f32.mrb[0].mxu0
        %v1821 = vadd.f32 0.0, %v1820
        %v1822 = vpop.f32.mrb[0].mxu0
        %1823 = vdwg.mxu0
        %1824 = vrot.lane.b32.xlu0 %v872, 40
        %v1825 = vpop.permute.xlu0 %1824
        %v1828 = vsel %vm974, %v1776, 0
        %1830 = vmatprep.subr.bf16.mxu0 0
        %1831 = vmatpush1.bf16.msra.mxu0 %v1825
        %1832 = vmatprep.subr.bf16.mxu0 0
        %1833 = vmatpush1.bf16.msra.mxu0 0
        %1834 = vmatprep.subr.bf16.mxu0 0
        %1835 = vmatpush1.bf16.msra.mxu0 0
        %1836 = vmatprep.subr.bf16.mxu0 0
        %1837 = vmatpush1.bf16.msra.mxu0 0
        %1838 = vmatprep.subr.bf16.mxu0 0
        %1839 = vmatpush1.bf16.msra.mxu0 0
        %1840 = vmatprep.subr.bf16.mxu0 0
        %1841 = vmatpush1.bf16.msra.mxu0 0
        %1842 = vmatprep.subr.bf16.mxu0 0
        %1843 = vmatpush1.bf16.msra.mxu0 0
        %1844 = vmatprep.subr.bf16.mxu0 0
        %1845 = vmatpush1.bf16.msra.mxu0 0
        %1846 = vmatprep.subr.bf16.mxu0 0
        %1847 = vmatpush1.bf16.msra.mxu0 0
        %1848 = vmatprep.subr.bf16.mxu0 0
        %1849 = vmatpush1.bf16.msra.mxu0 0
        %1850 = vmatprep.subr.bf16.mxu0 0
        %1851 = vmatpush1.bf16.msra.mxu0 0
        %1852 = vmatprep.subr.bf16.mxu0 0
        %1853 = vmatpush1.bf16.msra.mxu0 0
        %1854 = vmatprep.subr.bf16.mxu0 0
        %1855 = vmatpush1.bf16.msra.mxu0 0
        %1856 = vmatprep.subr.bf16.mxu0 0
        %1857 = vmatpush1.bf16.msra.mxu0 0
        %1858 = vmatprep.subr.bf16.mxu0 0
        %1859 = vmatpush1.bf16.msra.mxu0 0
        %1860 = vmatprep.subr.bf16.mxu0 0
        %1861 = vmatpush1.bf16.msra.mxu0 0
        %1862 = vmatprep.mubr.bf16.mxu0 0
        %1863 = vmatmul.mubr.bf16.gmra.mrb[0].mxu0 %v1828
        %v1864 = vpop.f32.mrb[0].mxu0
        %v1865 = vadd.f32 0.0, %v1864
        %v1866 = vpop.f32.mrb[0].mxu0
        %v1867 = vpop.f32.mrb[0].mxu0
        %v1868 = vadd.f32 0.0, %v1867
        %v1869 = vpop.f32.mrb[0].mxu0
        %1870 = vdwg.mxu0
        %v1871 = vpack.c.bf16 %v1821, %v1818
        %v1872 = vpack.c.bf16 %v1868, %v1865
        %1875 = vrot.lane.b32.xlu0 %v1871, 24
        %v1876 = vpop.permute.xlu0 %1875
        %1877 = vrot.lane.b32.xlu0 %v1872, 24
        %v1878 = vpop.permute.xlu0 %1877
        %vm1881 = vcmask 261312
        %1882 = vst.msk [vmem:[#allocation3] sm:$0xff] %vm1881, %v1876
        %1883 = vst.msk [vmem:[#allocation3 + $0x8] sm:$0xff] %vm1881, %v1878
        %v1884 = vld [vmem:[#allocation3] sm:$0xff]
        %v1885 = vld [vmem:[#allocation3 + $0x8] sm:$0xff]
        %v1886 = vld [vmem:[%s683] sm:$0xf]
        %v1887 = vld [vmem:[%s683 + $0x4] sm:$0xf]
        %v1888 = vld [vmem:[%s683 + $0x8] sm:$0xf]
        %v1889 = vld [vmem:[%s683 + $0xc] sm:$0xf]
        %v1894 = vunpack.c.l.b16 %v1886
        %v1895 = vunpack.c.l.b16 %v1887
        %v1896 = vunpack.c.l.b16 %v1888
        %v1897 = vunpack.c.l.b16 %v1889
        %v1898 = vpack.c.b16 %v1895, %v1894
        %v1899 = vpack.c.b16 %v1897, %v1896
        %v1903 = vsel %vm724, %v1884, 0
        %v1906 = vsel %vm724, %v1885, 0
        %1908 = vmatprep.subr.bf16.mxu0 0
        %1909 = vmatpush1.bf16.msra.mxu0 %v1898
        %1910 = vmatprep.subr.bf16.mxu0 0
        %1911 = vmatpush1.bf16.msra.mxu0 %v1899
        %1912 = vmatprep.subr.bf16.mxu0 0
        %1913 = vmatpush1.bf16.msra.mxu0 0
        %1914 = vmatprep.subr.bf16.mxu0 0
        %1915 = vmatpush1.bf16.msra.mxu0 0
        %1916 = vmatprep.subr.bf16.mxu0 0
        %1917 = vmatpush1.bf16.msra.mxu0 0
        %1918 = vmatprep.subr.bf16.mxu0 0
        %1919 = vmatpush1.bf16.msra.mxu0 0
        %1920 = vmatprep.subr.bf16.mxu0 0
        %1921 = vmatpush1.bf16.msra.mxu0 0
        %1922 = vmatprep.subr.bf16.mxu0 0
        %1923 = vmatpush1.bf16.msra.mxu0 0
        %1924 = vmatprep.subr.bf16.mxu0 0
        %1925 = vmatpush1.bf16.msra.mxu0 0
        %1926 = vmatprep.subr.bf16.mxu0 0
        %1927 = vmatpush1.bf16.msra.mxu0 0
        %1928 = vmatprep.subr.bf16.mxu0 0
        %1929 = vmatpush1.bf16.msra.mxu0 0
        %1930 = vmatprep.subr.bf16.mxu0 0
        %1931 = vmatpush1.bf16.msra.mxu0 0
        %1932 = vmatprep.subr.bf16.mxu0 0
        %1933 = vmatpush1.bf16.msra.mxu0 0
        %1934 = vmatprep.subr.bf16.mxu0 0
        %1935 = vmatpush1.bf16.msra.mxu0 0
        %1936 = vmatprep.subr.bf16.mxu0 0
        %1937 = vmatpush1.bf16.msra.mxu0 0
        %1938 = vmatprep.subr.bf16.mxu0 0
        %1939 = vmatpush1.bf16.msra.mxu0 0
        %1940 = vmatprep.mubr.bf16.mxu0 0
        %1941 = vmatmul.mubr.bf16.gmra.mrb[0].mxu0 %v1903
        %v1942 = vpop.f32.mrb[0].mxu0
        %v1943 = vadd.f32 0.0, %v1942
        %v1944 = vpop.f32.mrb[0].mxu0
        %v1945 = vpop.f32.mrb[0].mxu0
        %v1946 = vadd.f32 0.0, %v1945
        %v1947 = vpop.f32.mrb[0].mxu0
        %1948 = vmatprep.mubr.bf16.mxu0 0
        %1949 = vmatmul.mubr.bf16.gmra.mrb[0].mxu0 %v1906
        %v1950 = vpop.f32.mrb[0].mxu0
        %v1951 = vadd.f32 0.0, %v1950
        %v1952 = vpop.f32.mrb[0].mxu0
        %v1953 = vpop.f32.mrb[0].mxu0
        %v1954 = vadd.f32 0.0, %v1953
        %v1955 = vpop.f32.mrb[0].mxu0
        %1956 = vdwg.mxu0
        %v1957 = vadd.f32 %v718, %v1943
        %v1958 = vadd.f32 %v719, %v1946
        %v1959 = vadd.f32 %v720, %v1951
        %v1960 = vadd.f32 %v721, %v1954
        %v1961 = vld [vmem:[%s563] sm:$0x1]
        %v1962 = vld [vmem:[%s571] sm:$0x1]
        %v1963 = vsel %vm724, %v1957, 0.0
        %1964 = vadd.xlane.f32.xlu0 %v1963
        %v1965 = vpop.xlane.xlu0 %1964
        %v1966 = vsel %vm724, %v1958, 0.0
        %1967 = vadd.xlane.f32.xlu0 %v1966
        %v1968 = vpop.xlane.xlu0 %1967
        %v1969 = vsel %vm724, %v1959, 0.0
        %1970 = vadd.xlane.f32.xlu0 %v1969
        %v1971 = vpop.xlane.xlu0 %1970
        %v1972 = vsel %vm724, %v1960, 0.0
        %1973 = vadd.xlane.f32.xlu0 %v1972
        %v1974 = vpop.xlane.xlu0 %1973
        %v1975 = vmul.f32 %v1965, %v737
        %v1976 = vmul.f32 %v1968, %v737
        %v1977 = vmul.f32 %v1971, %v737
        %v1978 = vmul.f32 %v1974, %v737
        %v1979 = vsub.f32 %v1957, %v1975
        %v1980 = vsub.f32 %v1958, %v1976
        %v1981 = vsub.f32 %v1959, %v1977
        %v1982 = vsub.f32 %v1960, %v1978
        %v1983 = vmul.f32 %v1979, %v1979
        %v1984 = vmul.f32 %v1980, %v1980
        %v1985 = vmul.f32 %v1981, %v1981
        %v1986 = vmul.f32 %v1982, %v1982
        %v1987 = vsel %vm724, %v1983, 0.0
        %1988 = vadd.xlane.f32.xlu0 %v1987
        %v1989 = vpop.xlane.xlu0 %1988
        %v1990 = vsel %vm724, %v1984, 0.0
        %1991 = vadd.xlane.f32.xlu0 %v1990
        %v1992 = vpop.xlane.xlu0 %1991
        %v1993 = vsel %vm724, %v1985, 0.0
        %1994 = vadd.xlane.f32.xlu0 %v1993
        %v1995 = vpop.xlane.xlu0 %1994
        %v1996 = vsel %vm724, %v1986, 0.0
        %1997 = vadd.xlane.f32.xlu0 %v1996
        %v1998 = vpop.xlane.xlu0 %1997
        %v1999 = vmul.f32 %v1989, %v737
        %v2000 = vmul.f32 %v1992, %v737
        %v2001 = vmul.f32 %v1995, %v737
        %v2002 = vmul.f32 %v1998, %v737
        %v2003 = vadd.f32 %v1999, 1e-05
        %v2004 = vadd.f32 %v2000, 1e-05
        %v2005 = vadd.f32 %v2001, 1e-05
        %v2006 = vadd.f32 %v2002, 1e-05
        %v2007 = vrsqrt.pop %v2003
        %v2008 = vrsqrt.pop %v2004
        %v2009 = vrsqrt.pop %v2005
        %v2010 = vrsqrt.pop %v2006
        %v2011 = vmul.f32 %v1979, %v2007
        %v2012 = vmul.f32 %v1980, %v2008
        %v2013 = vmul.f32 %v1981, %v2009
        %v2014 = vmul.f32 %v1982, %v2010
        %v2016 = vlaneseq
        %v2017 = vshrl.u32 %v2016, 7
        %v2018 = vsub.s32 0, %v2017
        %v2019 = vrot.slane %v1961, %v2018
        %v2021 = vmul.f32 %v2011, %v2019
        %v2022 = vmul.f32 %v2012, %v2019
        %v2023 = vmul.f32 %v2013, %v2019
        %v2024 = vmul.f32 %v2014, %v2019
        %v2026 = vlaneseq
        %v2027 = vshrl.u32 %v2026, 7
        %v2028 = vsub.s32 0, %v2027
        %v2029 = vrot.slane %v1962, %v2028
        %v2031 = vadd.f32 %v2021, %v2029
        %v2032 = vadd.f32 %v2022, %v2029
        %v2033 = vadd.f32 %v2023, %v2029
        %v2034 = vadd.f32 %v2024, %v2029
        %v2035 = vpack.c.bf16 %v2032, %v2031
        %v2036 = vpack.c.bf16 %v2034, %v2033
        %v2037 = vld [vmem:[%s688] sm:$0xf]
        %v2038 = vld [vmem:[%s688 + $0x4] sm:$0xf]
        %v2039 = vld [vmem:[%s688 + $0x8] sm:$0xf]
        %v2040 = vld [vmem:[%s688 + $0xc] sm:$0xf]
        %v2041 = vld [vmem:[%s579] sm:$0x1]
        %v2043 = vlaneseq
        %v2044 = vshrl.u32 %v2043, 7
        %v2045 = vsub.s32 0, %v2044
        %v2046 = vrot.slane %v2041, %v2045
        %v2052 = vunpack.c.l.b16 %v2037
        %v2053 = vunpack.c.l.b16 %v2038
        %v2054 = vunpack.c.l.b16 %v2039
        %v2055 = vunpack.c.l.b16 %v2040
        %v2056 = vpack.c.b16 %v2053, %v2052
        %v2057 = vpack.c.b16 %v2055, %v2054
        %v2061 = vsel %vm724, %v2035, 0
        %v2064 = vsel %vm724, %v2036, 0
        %2066 = vmatprep.subr.bf16.mxu0 0
        %2067 = vmatpush1.bf16.msra.mxu0 %v2056
        %2068 = vmatprep.subr.bf16.mxu0 0
        %2069 = vmatpush1.bf16.msra.mxu0 %v2057
        %2070 = vmatprep.subr.bf16.mxu0 0
        %2071 = vmatpush1.bf16.msra.mxu0 0
        %2072 = vmatprep.subr.bf16.mxu0 0
        %2073 = vmatpush1.bf16.msra.mxu0 0
        %2074 = vmatprep.subr.bf16.mxu0 0
        %2075 = vmatpush1.bf16.msra.mxu0 0
        %2076 = vmatprep.subr.bf16.mxu0 0
        %2077 = vmatpush1.bf16.msra.mxu0 0
        %2078 = vmatprep.subr.bf16.mxu0 0
        %2079 = vmatpush1.bf16.msra.mxu0 0
        %2080 = vmatprep.subr.bf16.mxu0 0
        %2081 = vmatpush1.bf16.msra.mxu0 0
        %2082 = vmatprep.subr.bf16.mxu0 0
        %2083 = vmatpush1.bf16.msra.mxu0 0
        %2084 = vmatprep.subr.bf16.mxu0 0
        %2085 = vmatpush1.bf16.msra.mxu0 0
        %2086 = vmatprep.subr.bf16.mxu0 0
        %2087 = vmatpush1.bf16.msra.mxu0 0
        %2088 = vmatprep.subr.bf16.mxu0 0
        %2089 = vmatpush1.bf16.msra.mxu0 0
        %2090 = vmatprep.subr.bf16.mxu0 0
        %2091 = vmatpush1.bf16.msra.mxu0 0
        %2092 = vmatprep.subr.bf16.mxu0 0
        %2093 = vmatpush1.bf16.msra.mxu0 0
        %2094 = vmatprep.subr.bf16.mxu0 0
        %2095 = vmatpush1.bf16.msra.mxu0 0
        %2096 = vmatprep.subr.bf16.mxu0 0
        %2097 = vmatpush1.bf16.msra.mxu0 0
        %2098 = vmatprep.mubr.bf16.mxu0 0
        %2099 = vmatmul.mubr.bf16.gmra.mrb[0].mxu0 %v2061
        %v2100 = vpop.f32.mrb[0].mxu0
        %v2101 = vadd.f32 %v2046, %v2100
        %v2102 = vpop.f32.mrb[0].mxu0
        %v2103 = vpop.f32.mrb[0].mxu0
        %v2104 = vadd.f32 %v2046, %v2103
        %v2105 = vpop.f32.mrb[0].mxu0
        %2106 = vmatprep.mubr.bf16.mxu0 0
        %2107 = vmatmul.mubr.bf16.gmra.mrb[0].mxu0 %v2064
        %v2108 = vpop.f32.mrb[0].mxu0
        %v2109 = vadd.f32 %v2046, %v2108
        %v2110 = vpop.f32.mrb[0].mxu0
        %v2111 = vpop.f32.mrb[0].mxu0
        %v2112 = vadd.f32 %v2046, %v2111
        %v2113 = vpop.f32.mrb[0].mxu0
        %2114 = vdwg.mxu0
        %v2115 = vmul.f32 %v2101, 0.5
        %v2116 = vmul.f32 %v2104, 0.5
        %v2117 = vmul.f32 %v2109, 0.5
        %v2118 = vmul.f32 %v2112, 0.5
        %v2119 = vmul.f32 %v2101, 0.044715
        %v2120 = vmul.f32 %v2104, 0.044715
        %v2121 = vmul.f32 %v2109, 0.044715
        %v2122 = vmul.f32 %v2112, 0.044715
        %v2123 = vmul.f32 %v2119, %v2101
        %v2124 = vmul.f32 %v2120, %v2104
        %v2125 = vmul.f32 %v2121, %v2109
        %v2126 = vmul.f32 %v2122, %v2112
        %v2127 = vmul.f32 %v2123, %v2101
        %v2128 = vmul.f32 %v2124, %v2104
        %v2129 = vmul.f32 %v2125, %v2109
        %v2130 = vmul.f32 %v2126, %v2112
        %v2131 = vadd.f32 %v2101, %v2127
        %v2132 = vadd.f32 %v2104, %v2128
        %v2133 = vadd.f32 %v2109, %v2129
        %v2134 = vadd.f32 %v2112, %v2130
        %v2135 = vmul.f32 %v2131, 0.7978846
        %v2136 = vmul.f32 %v2132, 0.7978846
        %v2137 = vmul.f32 %v2133, 0.7978846
        %v2138 = vmul.f32 %v2134, 0.7978846
        %v2139 = vtanh.pop %v2135
        %v2140 = vtanh.pop %v2136
        %v2141 = vtanh.pop %v2137
        %v2142 = vtanh.pop %v2138
        %v2143 = vadd.f32 %v2139, 1.0
        %v2144 = vadd.f32 %v2140, 1.0
        %v2145 = vadd.f32 %v2141, 1.0
        %v2146 = vadd.f32 %v2142, 1.0
        %v2147 = vmul.f32 %v2115, %v2143
        %v2148 = vmul.f32 %v2116, %v2144
        %v2149 = vmul.f32 %v2117, %v2145
        %v2150 = vmul.f32 %v2118, %v2146
        %v2151 = vpack.c.bf16 %v2148, %v2147
        %v2152 = vpack.c.bf16 %v2150, %v2149
        %v2153 = vld [vmem:[%s693] sm:$0xf]
        %v2154 = vld [vmem:[%s693 + $0x4] sm:$0xf]
        %v2155 = vld [vmem:[%s693 + $0x8] sm:$0xf]
        %v2156 = vld [vmem:[%s693 + $0xc] sm:$0xf]
        %v2157 = vld [vmem:[%s693 + $0x10] sm:$0xf]
        %v2158 = vld [vmem:[%s693 + $0x14] sm:$0xf]
        %v2159 = vld [vmem:[%s693 + $0x18] sm:$0xf]
        %v2160 = vld [vmem:[%s693 + $0x1c] sm:$0xf]
        %v2161 = vld [vmem:[%s693 + $0x20] sm:$0xf]
        %v2162 = vld [vmem:[%s693 + $0x24] sm:$0xf]
        %v2163 = vld [vmem:[%s693 + $0x28] sm:$0xf]
        %v2164 = vld [vmem:[%s693 + $0x2c] sm:$0xf]
        %v2165 = vld [vmem:[%s693 + $0x30] sm:$0xf]
        %v2166 = vld [vmem:[%s693 + $0x34] sm:$0xf]
        %v2167 = vld [vmem:[%s693 + $0x38] sm:$0xf]
        %v2168 = vld [vmem:[%s693 + $0x3c] sm:$0xf]
        %v2169 = vld [vmem:[%s696] sm:$0x1]
        %v2171 = vlaneseq
        %v2172 = vshrl.u32 %v2171, 7
        %v2173 = vsub.s32 0, %v2172
        %v2174 = vrot.slane %v2169, %v2173
        %v2192 = vunpack.c.l.b16 %v2153
        %v2193 = vunpack.c.l.b16 %v2154
        %v2194 = vunpack.c.l.b16 %v2155
        %v2195 = vunpack.c.l.b16 %v2156
        %v2196 = vunpack.c.l.b16 %v2157
        %v2197 = vunpack.c.l.b16 %v2158
        %v2198 = vunpack.c.l.b16 %v2159
        %v2199 = vunpack.c.l.b16 %v2160
        %v2200 = vunpack.c.l.b16 %v2161
        %v2201 = vunpack.c.l.b16 %v2162
        %v2202 = vunpack.c.l.b16 %v2163
        %v2203 = vunpack.c.l.b16 %v2164
        %v2204 = vunpack.c.l.b16 %v2165
        %v2205 = vunpack.c.l.b16 %v2166
        %v2206 = vunpack.c.l.b16 %v2167
        %v2207 = vunpack.c.l.b16 %v2168
        %v2208 = vpack.c.b16 %v2193, %v2192
        %v2209 = vpack.c.b16 %v2195, %v2194
        %v2210 = vpack.c.b16 %v2197, %v2196
        %v2211 = vpack.c.b16 %v2199, %v2198
        %v2212 = vpack.c.b16 %v2201, %v2200
        %v2213 = vpack.c.b16 %v2203, %v2202
        %v2214 = vpack.c.b16 %v2205, %v2204
        %v2215 = vpack.c.b16 %v2207, %v2206
        %2224 = vmatprep.subr.bf16.mxu0 0
        %2225 = vmatpush1.bf16.msra.mxu0 %v2208
        %2226 = vmatprep.subr.bf16.mxu0 0
        %2227 = vmatpush1.bf16.msra.mxu0 %v2209
        %2228 = vmatprep.subr.bf16.mxu0 0
        %2229 = vmatpush1.bf16.msra.mxu0 %v2210
        %2230 = vmatprep.subr.bf16.mxu0 0
        %2231 = vmatpush1.bf16.msra.mxu0 %v2211
        %2232 = vmatprep.subr.bf16.mxu0 0
        %2233 = vmatpush1.bf16.msra.mxu0 %v2212
        %2234 = vmatprep.subr.bf16.mxu0 0
        %2235 = vmatpush1.bf16.msra.mxu0 %v2213
        %2236 = vmatprep.subr.bf16.mxu0 0
        %2237 = vmatpush1.bf16.msra.mxu0 %v2214
        %2238 = vmatprep.subr.bf16.mxu0 0
        %2239 = vmatpush1.bf16.msra.mxu0 %v2215
        %2240 = vmatprep.subr.bf16.mxu0 0
        %2241 = vmatpush1.bf16.msra.mxu0 0
        %2242 = vmatprep.subr.bf16.mxu0 0
        %2243 = vmatpush1.bf16.msra.mxu0 0
        %2244 = vmatprep.subr.bf16.mxu0 0
        %2245 = vmatpush1.bf16.msra.mxu0 0
        %2246 = vmatprep.subr.bf16.mxu0 0
        %2247 = vmatpush1.bf16.msra.mxu0 0
        %2248 = vmatprep.subr.bf16.mxu0 0
        %2249 = vmatpush1.bf16.msra.mxu0 0
        %2250 = vmatprep.subr.bf16.mxu0 0
        %2251 = vmatpush1.bf16.msra.mxu0 0
        %2252 = vmatprep.subr.bf16.mxu0 0
        %2253 = vmatpush1.bf16.msra.mxu0 0
        %2254 = vmatprep.subr.bf16.mxu0 0
        %2255 = vmatpush1.bf16.msra.mxu0 0
        %2256 = vmatprep.mubr.bf16.mxu0 0
        %2257 = vmatmul.mubr.bf16.gmra.mrb[0].mxu0 %v2151
        %v2258 = vpop.f32.mrb[0].mxu0
        %v2259 = vadd.f32 %v2174, %v2258
        %v2260 = vpop.f32.mrb[0].mxu0
        %v2261 = vpop.f32.mrb[0].mxu0
        %v2262 = vadd.f32 %v2174, %v2261
        %v2263 = vpop.f32.mrb[0].mxu0
        %2264 = vmatprep.mubr.bf16.mxu0 0
        %2265 = vmatmul.mubr.bf16.gmra.mrb[0].mxu0 %v2152
        %v2266 = vpop.f32.mrb[0].mxu0
        %v2267 = vadd.f32 %v2174, %v2266
        %v2268 = vpop.f32.mrb[0].mxu0
        %v2269 = vpop.f32.mrb[0].mxu0
        %v2270 = vadd.f32 %v2174, %v2269
        %v2271 = vpop.f32.mrb[0].mxu0
        %2272 = vdwg.mxu0
        %v2273 = vmul.f32 %v2259, 0.5
        %v2274 = vmul.f32 %v2262, 0.5
        %v2275 = vmul.f32 %v2267, 0.5
        %v2276 = vmul.f32 %v2270, 0.5
        %v2277 = vmul.f32 %v2259, 0.044715
        %v2278 = vmul.f32 %v2262, 0.044715
        %v2279 = vmul.f32 %v2267, 0.044715
        %v2280 = vmul.f32 %v2270, 0.044715
        %v2281 = vmul.f32 %v2277, %v2259
        %v2282 = vmul.f32 %v2278, %v2262
        %v2283 = vmul.f32 %v2279, %v2267
        %v2284 = vmul.f32 %v2280, %v2270
        %v2285 = vmul.f32 %v2281, %v2259
        %v2286 = vmul.f32 %v2282, %v2262
        %v2287 = vmul.f32 %v2283, %v2267
        %v2288 = vmul.f32 %v2284, %v2270
        %v2289 = vadd.f32 %v2259, %v2285
        %v2290 = vadd.f32 %v2262, %v2286
        %v2291 = vadd.f32 %v2267, %v2287
        %v2292 = vadd.f32 %v2270, %v2288
        %v2293 = vmul.f32 %v2289, 0.7978846
        %v2294 = vmul.f32 %v2290, 0.7978846
        %v2295 = vmul.f32 %v2291, 0.7978846
        %v2296 = vmul.f32 %v2292, 0.7978846
        %v2297 = vtanh.pop %v2293
        %v2298 = vtanh.pop %v2294
        %v2299 = vtanh.pop %v2295
        %v2300 = vtanh.pop %v2296
        %v2301 = vadd.f32 %v2297, 1.0
        %v2302 = vadd.f32 %v2298, 1.0
        %v2303 = vadd.f32 %v2299, 1.0
        %v2304 = vadd.f32 %v2300, 1.0
        %v2305 = vmul.f32 %v2273, %v2301
        %v2306 = vmul.f32 %v2274, %v2302
        %v2307 = vmul.f32 %v2275, %v2303
        %v2308 = vmul.f32 %v2276, %v2304
        %v2309 = vadd.f32 %v1957, %v2305
        %v2310 = vadd.f32 %v1958, %v2306
        %v2311 = vadd.f32 %v1959, %v2307
        %v2312 = vadd.f32 %v1960, %v2308
        %2313 = vst.msk [vmem:[#allocation2] sm:$0xff] %vm724, %v2309
        %2314 = vst.msk [vmem:[#allocation2 + $0x8] sm:$0xff] %vm724, %v2310
        %2315 = vst.msk [vmem:[#allocation2 + $0x10] sm:$0xff] %vm724, %v2311
        %2316 = vst.msk [vmem:[#allocation2 + $0x18] sm:$0xff] %vm724, %v2312
        %p2317 = scmp.eq.s32.totalorder %s37, 1
        // Predicated region
        $region93: #{tpu_custom_call.1} parent=75 // pred_check
          %p2318 = pneg %p2317
        $region94: #{tpu_custom_call.1} parent=75 // pred_check_branch
          %2320 = sbr.rel (%p2318) target = $region96
        $region95: #{tpu_custom_call.1} parent=75 // pred_region
          %v2321 = vpack.c.bf16 %v2310, %v2309
          %v2322 = vpack.c.bf16 %v2312, %v2311
          %v2323 = vld [vmem:[%s12] sm:$0xf]
          %v2324 = vld [vmem:[%s12 + $0x4] sm:$0xf]
          %v2325 = vld [vmem:[%s12 + $0x8] sm:$0xf]
          %v2326 = vld [vmem:[%s12 + $0xc] sm:$0xf]
          %v2327 = vld [vmem:[%s13] sm:$0x1]
          %v2329 = vlaneseq
          %v2330 = vshrl.u32 %v2329, 7
          %v2331 = vsub.s32 0, %v2330
          %v2332 = vrot.slane %v2327, %v2331
          %v2338 = vunpack.c.l.b16 %v2323
          %v2339 = vunpack.c.l.b16 %v2324
          %v2340 = vunpack.c.l.b16 %v2325
          %v2341 = vunpack.c.l.b16 %v2326
          %v2342 = vpack.c.b16 %v2339, %v2338
          %v2343 = vpack.c.b16 %v2341, %v2340
          %v2347 = vsel %vm724, %v2321, 0
          %v2350 = vsel %vm724, %v2322, 0
          %2352 = vmatprep.subr.bf16.mxu0 0
          %2353 = vmatpush1.bf16.msra.mxu0 %v2342
          %2354 = vmatprep.subr.bf16.mxu0 0
          %2355 = vmatpush1.bf16.msra.mxu0 %v2343
          %2356 = vmatprep.subr.bf16.mxu0 0
          %2357 = vmatpush1.bf16.msra.mxu0 0
          %2358 = vmatprep.subr.bf16.mxu0 0
          %2359 = vmatpush1.bf16.msra.mxu0 0
          %2360 = vmatprep.subr.bf16.mxu0 0
          %2361 = vmatpush1.bf16.msra.mxu0 0
          %2362 = vmatprep.subr.bf16.mxu0 0
          %2363 = vmatpush1.bf16.msra.mxu0 0
          %2364 = vmatprep.subr.bf16.mxu0 0
          %2365 = vmatpush1.bf16.msra.mxu0 0
          %2366 = vmatprep.subr.bf16.mxu0 0
          %2367 = vmatpush1.bf16.msra.mxu0 0
          %2368 = vmatprep.subr.bf16.mxu0 0
          %2369 = vmatpush1.bf16.msra.mxu0 0
          %2370 = vmatprep.subr.bf16.mxu0 0
          %2371 = vmatpush1.bf16.msra.mxu0 0
          %2372 = vmatprep.subr.bf16.mxu0 0
          %2373 = vmatpush1.bf16.msra.mxu0 0
          %2374 = vmatprep.subr.bf16.mxu0 0
          %2375 = vmatpush1.bf16.msra.mxu0 0
          %2376 = vmatprep.subr.bf16.mxu0 0
          %2377 = vmatpush1.bf16.msra.mxu0 0
          %2378 = vmatprep.subr.bf16.mxu0 0
          %2379 = vmatpush1.bf16.msra.mxu0 0
          %2380 = vmatprep.subr.bf16.mxu0 0
          %2381 = vmatpush1.bf16.msra.mxu0 0
          %2382 = vmatprep.subr.bf16.mxu0 0
          %2383 = vmatpush1.bf16.msra.mxu0 0
          %2384 = vmatprep.mubr.bf16.mxu0 0
          %2385 = vmatmul.mubr.bf16.gmra.mrb[0].mxu0 %v2347
          %v2386 = vpop.f32.mrb[0].mxu0
          %v2387 = vadd.f32 %v2332, %v2386
          %v2388 = vpop.f32.mrb[0].mxu0
          %v2389 = vpop.f32.mrb[0].mxu0
          %v2390 = vadd.f32 %v2332, %v2389
          %v2391 = vpop.f32.mrb[0].mxu0
          %2392 = vmatprep.mubr.bf16.mxu0 0
          %2393 = vmatmul.mubr.bf16.gmra.mrb[0].mxu0 %v2350
          %v2394 = vpop.f32.mrb[0].mxu0
          %v2395 = vadd.f32 %v2332, %v2394
          %v2396 = vpop.f32.mrb[0].mxu0
          %v2397 = vpop.f32.mrb[0].mxu0
          %v2398 = vadd.f32 %v2332, %v2397
          %v2399 = vpop.f32.mrb[0].mxu0
          %2400 = vdwg.mxu0
          %2401 = vst [vmem:[#allocation10] sm:$0xff] %v2387
          %2402 = vst [vmem:[#allocation10 + $0x8] sm:$0xff] %v2390
          %2403 = vst [vmem:[#allocation10 + $0x10] sm:$0xff] %v2395
          %2404 = vst [vmem:[#allocation10 + $0x18] sm:$0xff] %v2398
        $region96: #{tpu_custom_call.1} parent=75 // pred_fallthru
          _
        // Predicated region
        $region97: #{tpu_custom_call.1} parent=75 // pred_check
          %p2405 = pneg %p411
        $region98: #{tpu_custom_call.1} parent=75 // pred_check_branch
          %2407 = sbr.rel (%p2405) target = $region100
        $region99: #{tpu_custom_call.1} parent=75 // pred_region
          %s2408 = smul.u32 2, %s36
          %s2410 = ssub.s32 512, 512
          %2411 = vsyncadd [#allocation6], %s2410
          %s2412 = smul.addr %s2408, 2
          %s2413 = smul.addr %s2412, 128
          %s2414 = scalar_lea.hbm %s14, %s2413
          %s2415 = sshll.u32 [#allocation10], 4
          %s2416 = int_to_ptr.vmem [resolvable:$true] %s2415
          %2421 = dma.vmem_to_hbm [thread:$0]  %s2416, 512, %s2414, [#allocation6], 128, 128, 8
        $region100: #{tpu_custom_call.1} parent=75 // pred_fallthru
          _
        // Predicated region
        $region101: #{tpu_custom_call.1} parent=75 // pred_check
          %p2422 = pneg %p411
        $region102: #{tpu_custom_call.1} parent=75 // pred_check_branch
          %2424 = sbr.rel (%p2422) target = $region104
        $region103: #{tpu_custom_call.1} parent=75 // pred_region
          %2425 = dma.done [#allocation6], 512
        $region104: #{tpu_custom_call.1} parent=75 // pred_fallthru
          _
      $region76: #{tpu_custom_call.1} parent=5 // pred_fallthru
        _
      %p2426 = scmp.le.s32.totalorder 2, %s27
      // Predicated region
      $region105: #{tpu_custom_call.1} parent=5 // pred_check
        %p2427 = pneg %p2426
      $region106: #{tpu_custom_call.1} parent=5 // pred_check_branch
        %2429 = sbr.rel (%p2427) target = $region108
      $region107: #{tpu_custom_call.1} parent=5 // pred_region
        %s2430 = ssub.s32 %s27, 2
      $region108: #{tpu_custom_call.1} parent=5 // pred_fallthru
        _
    $region6: #{tpu_custom_call.1} parent=1 // loop_footer
      %s31 = sadd.s32 1, %s27
    $region7: #{tpu_custom_call.1} parent=1 // loop_footer_branch
      %26 = sbr.rel target = $region3
    $region8: #{tpu_custom_call.1} parent=1 // loop_exit
      _
    %2431 = vsyncpa [#allocation5], 1
    %s2432 = scalar_lea.sflag [#allocation5], 1
    %2433 = vsyncpa %s2432, 1
    %2434 = vsyncpa [#allocation8], 1
    %s2435 = scalar_lea.sflag [#allocation8], 1
    %2436 = vsyncpa %s2435, 1
    %2437 = vsyncpa [#allocation6], 1
    %s2438 = scalar_lea.sflag [#allocation6], 1
    %2439 = vsyncpa %s2438, 1

</llo_original>
